<compile_context>
chip_gen: v5e
topology: v5e:2x2
jax: 0.10.0
libtpu: 0.0.40
codegen_flags: <defaults>
</compile_context>

<pallas_src>
import functools
import math

import jax
import jax.numpy as jnp
from jax import lax
from jax.experimental import pallas as pl
from jax.experimental.pallas import tpu as pltpu


# GEMM tile targets: large enough to amortize the ~0.35us/step grid overhead
# and keep the 256x256 MXU busy on v6e/v7x, small enough that the
# double-buffered working set stays well under v7x's 64 MiB physical VMEM.
TM_TARGET = 512
TN_TARGET = 512
TK_TARGET = 1024
# Explicit scoped-VMEM budget (defaults are 16/32 MiB depending on chip); the
# largest kernel working set here is ~10 MiB, 40 MiB leaves headroom on v5e,
# v6e and v7x alike.
VMEM_LIMIT_BYTES = 40 * 1024 * 1024


def _pick_tile(dim, target, align):
    """Largest divisor of `dim` that is <= `target`, preferring multiples of
    `align` (128 for lane dims, 8 for sublane dims).

    Never collapses a grid axis to a single full-extent tile when a smaller
    aligned divisor exists, so large non-divisible dims keep pipelining and a
    bounded VMEM footprint."""
    if dim <= target:
        return dim
    best_unaligned = dim
    for t in range(target, 0, -1):
        if dim % t:
            continue
        if t % align == 0:
            return t
        if best_unaligned == dim:
            best_unaligned = t
    return best_unaligned


def _params(*dimension_semantics):
    return pltpu.CompilerParams(dimension_semantics=dimension_semantics,
                                vmem_limit_bytes=VMEM_LIMIT_BYTES)


# ----------------------------- Pallas kernels ------------------------------

_GELU_C = 0.7978845608028654  # sqrt(2/pi)


def _gemm_kernel(x_ref, w_ref, b_ref, o_ref, acc_ref, *, activation):
    """Tiled y = x @ w + b (optional tanh-GELU), f32 accumulation."""
    @pl.when(pl.program_id(2) == 0)
    def _():
        acc_ref[...] = jnp.zeros_like(acc_ref)

    acc_ref[...] += jnp.dot(x_ref[...], w_ref[...],
                            preferred_element_type=jnp.float32)

    @pl.when(pl.program_id(2) == pl.num_programs(2) - 1)
    def _():
        y = acc_ref[...] + b_ref[...].astype(jnp.float32)
        if activation == "gelu":
            # tanh-approx GELU: tanh rides the otherwise-idle EUP slot instead
            # of a VPU erf polynomial (notably cheaper on v5e's weaker VPU).
            y = 0.5 * y * (1.0 + jnp.tanh(_GELU_C * (y + 0.044715 * y * y * y)))
        o_ref[...] = y.astype(o_ref.dtype)


def linear(x, w, b, activation=None, out_dtype=jnp.bfloat16, weight_buffers=2):
    """Grid-tiled GEMM: bf16 inputs, f32 accumulator scratch, fused bias/GELU."""
    M, K = x.shape
    K2, N = w.shape
    assert K == K2
    x = x.astype(jnp.bfloat16)
    w = w.astype(jnp.bfloat16)
    tm = _pick_tile(M, TM_TARGET, 8)
    tn = _pick_tile(N, TN_TARGET, 128)
    tk = _pick_tile(K, TK_TARGET, 128)
    grid = (M // tm, N // tn, K // tk)

    # Deeper weight pipeline for small / memory-bound GEMMs (classifier head):
    # only when there are enough grid steps to actually fill the extra buffer.
    if weight_buffers > 2 and grid[0] * grid[1] * grid[2] >= weight_buffers:
        w_spec = pl.BlockSpec((tk, tn), lambda i, j, k: (k, j),
                              pipeline_mode=pl.Buffered(weight_buffers))
    else:
        w_spec = pl.BlockSpec((tk, tn), lambda i, j, k: (k, j))

    cost = pl.CostEstimate(
        flops=2 * M * N * K,
        transcendentals=M * N if activation == "gelu" else 0,
        bytes_accessed=M * K * 2 + K * N * 2 + M * N * jnp.dtype(out_dtype).itemsize,
    )
    kernel = functools.partial(_gemm_kernel, activation=activation)
    return pl.pallas_call(
        kernel,
        out_shape=jax.ShapeDtypeStruct((M, N), out_dtype),
        grid_spec=pltpu.PrefetchScalarGridSpec(
            num_scalar_prefetch=0,
            grid=grid,
            in_specs=[
                pl.BlockSpec((tm, tk), lambda i, j, k: (i, k)),
                w_spec,
                pl.BlockSpec((1, tn), lambda i, j, k: (0, j)),
            ],
            out_specs=pl.BlockSpec((tm, tn), lambda i, j, k: (i, j)),
            scratch_shapes=[pltpu.VMEM((tm, tn), jnp.float32)],
        ),
        compiler_params=_params("parallel", "parallel", "arbitrary"),
        cost_estimate=cost,
    )(x, w, b.reshape(1, N))


def _gemm_res_ln_kernel(x_ref, w_ref, b_ref, res_ref, g_ref, be_ref,
                        o_ref, acc_ref, *, eps):
    """Tiled y = LayerNorm(x @ w + b + residual); LN stats in f32."""
    @pl.when(pl.program_id(1) == 0)
    def _():
        acc_ref[...] = jnp.zeros_like(acc_ref)

    acc_ref[...] += jnp.dot(x_ref[...], w_ref[...],
                            preferred_element_type=jnp.float32)

    @pl.when(pl.program_id(1) == pl.num_programs(1) - 1)
    def _():
        h = (acc_ref[...] + b_ref[...].astype(jnp.float32)
             + res_ref[...].astype(jnp.float32))
        mu = jnp.mean(h, axis=-1, keepdims=True)
        var = jnp.mean((h - mu) * (h - mu), axis=-1, keepdims=True)
        y = (h - mu) * lax.rsqrt(var + eps) * g_ref[...] + be_ref[...]
        o_ref[...] = y.astype(o_ref.dtype)


def linear_res_ln(x, w, b, residual, gamma, beta, eps=1e-12,
                  out_dtype=jnp.bfloat16):
    """Fused GEMM + residual-add + LayerNorm.

    N tile spans the full hidden dim (LayerNorm needs the whole row), so the
    grid is (M tiles, K tiles) with the reduction axis last."""
    M, K = x.shape
    K2, N = w.shape
    assert K == K2 and residual.shape == (M, N)
    x = x.astype(jnp.bfloat16)
    w = w.astype(jnp.bfloat16)
    tm = _pick_tile(M, TM_TARGET, 8)
    tk = _pick_tile(K, TK_TARGET, 128)
    grid = (M // tm, K // tk)

    cost = pl.CostEstimate(
        flops=2 * M * N * K,
        transcendentals=0,
        bytes_accessed=(M * K * 2 + K * N * 2 + M * N * 2
                        + M * N * jnp.dtype(out_dtype).itemsize),
    )
    kernel = functools.partial(_gemm_res_ln_kernel, eps=eps)
    return pl.pallas_call(
        kernel,
        out_shape=jax.ShapeDtypeStruct((M, N), out_dtype),
        grid_spec=pltpu.PrefetchScalarGridSpec(
            num_scalar_prefetch=0,
            grid=grid,
            in_specs=[
                pl.BlockSpec((tm, tk), lambda i, k: (i, k)),
                pl.BlockSpec((tk, N), lambda i, k: (k, 0)),
                pl.BlockSpec((1, N), lambda i, k: (0, 0)),
                pl.BlockSpec((tm, N), lambda i, k: (i, 0)),   # residual
                pl.BlockSpec((1, N), lambda i, k: (0, 0)),    # gamma
                pl.BlockSpec((1, N), lambda i, k: (0, 0)),    # beta
            ],
            out_specs=pl.BlockSpec((tm, N), lambda i, k: (i, 0)),
            scratch_shapes=[pltpu.VMEM((tm, N), jnp.float32)],
        ),
        compiler_params=_params("parallel", "arbitrary"),
        cost_estimate=cost,
    )(x, w, b.reshape(1, N),
      residual.astype(jnp.bfloat16), gamma.reshape(1, N), beta.reshape(1, N))


def _ln_kernel(x_ref, g_ref, b_ref, o_ref, *, eps):
    """LayerNorm over the last (hidden) dim, no residual input."""
    h = x_ref[...].astype(jnp.float32)
    mu = jnp.mean(h, axis=-1, keepdims=True)
    var = jnp.mean((h - mu) * (h - mu), axis=-1, keepdims=True)
    o_ref[...] = ((h - mu) * lax.rsqrt(var + eps) * g_ref[...]
                  + b_ref[...]).astype(o_ref.dtype)


def layernorm(x, gamma, beta, eps=1e-12, out_dtype=jnp.bfloat16):
    # LN is HBM-bandwidth bound: read the activations as bf16 (stats are
    # computed in f32 inside the kernel regardless).
    x = x.astype(jnp.bfloat16)
    M, H = x.shape
    tm = _pick_tile(M, 512, 8)
    kernel = functools.partial(_ln_kernel, eps=eps)
    return pl.pallas_call(
        kernel,
        out_shape=jax.ShapeDtypeStruct((M, H), out_dtype),
        grid=(M // tm,),
        in_specs=[
            pl.BlockSpec((tm, H), lambda i: (i, 0)),
            pl.BlockSpec((1, H), lambda i: (0, 0)),
            pl.BlockSpec((1, H), lambda i: (0, 0)),
        ],
        out_specs=pl.BlockSpec((tm, H), lambda i: (i, 0)),
        compiler_params=_params("parallel"),
    )(x, gamma.reshape(1, H), beta.reshape(1, H))


def _qkv_kernel(x_ref, w_ref, b_ref, qo_ref, ko_ref, vo_ref, acc_ref, *, head_dim):
    """One (batch, seq-tile, head) block of the fused QKV projection, emitted
    directly in head-major layout (no XLA transposes / slices afterwards)."""
    @pl.when(pl.program_id(3) == 0)
    def _():
        acc_ref[...] = jnp.zeros_like(acc_ref)

    acc_ref[...] += jnp.dot(x_ref[0], w_ref[0],
                            preferred_element_type=jnp.float32)

    @pl.when(pl.program_id(3) == pl.num_programs(3) - 1)
    def _():
        d = head_dim
        bias = b_ref[0]                                        # (3, d) f32
        qo_ref[0, 0] = (acc_ref[:, :d] + bias[0]).astype(qo_ref.dtype)
        ko_ref[0, 0] = (acc_ref[:, d:2 * d] + bias[1]).astype(ko_ref.dtype)
        vo_ref[0, 0] = (acc_ref[:, 2 * d:] + bias[2]).astype(vo_ref.dtype)


def qkv_projection(x, w_hm, b_hm, batch, seq):
    """x:(B*S,H) @ head-major wqkv:(nh,H,3d) -> q,k,v each (B,nh,S,d) bf16."""
    nh, H, three_d = w_hm.shape
    d = three_d // 3
    x3 = x.astype(jnp.bfloat16).reshape(batch, seq, H)
    ts = _pick_tile(seq, TM_TARGET, 8)
    tk = _pick_tile(H, TK_TARGET, 128)
    grid = (batch, seq // ts, nh, H // tk)

    out_sd = jax.ShapeDtypeStruct((batch, nh, seq, d), jnp.bfloat16)
    head_spec = pl.BlockSpec((1, 1, ts, d), lambda b, i, h, k: (b, h, i, 0))
    cost = pl.CostEstimate(
        flops=2 * batch * seq * H * three_d * nh,
        transcendentals=0,
        bytes_accessed=(batch * seq * H * 2 + nh * H * three_d * 2
                        + 3 * batch * nh * seq * d * 2),
    )
    kernel = functools.partial(_qkv_kernel, head_dim=d)
    return pl.pallas_call(
        kernel,
        out_shape=(out_sd, out_sd, out_sd),
        grid_spec=pltpu.PrefetchScalarGridSpec(
            num_scalar_prefetch=0,
            grid=grid,
            in_specs=[
                # x block index ignores the head axis -> it stays resident in
                # VMEM across the inner head steps (no redundant re-DMA).
                pl.BlockSpec((1, ts, tk), lambda b, i, h, k: (b, i, k)),
                pl.BlockSpec((1, tk, three_d), lambda b, i, h, k: (h, k, 0)),
                pl.BlockSpec((1, 3, d), lambda b, i, h, k: (h, 0, 0)),
            ],
            out_specs=[head_spec, head_spec, head_spec],
            scratch_shapes=[pltpu.VMEM((ts, three_d), jnp.float32)],
        ),
        compiler_params=_params("parallel", "parallel", "parallel", "arbitrary"),
        cost_estimate=cost,
    )(x3, w_hm, b_hm)


def _mha_kernel(q_ref, k_ref, v_ref, m_ref, o_ref, *, scale):
    """One (batch, head) attention block: (S,S) f32 scores, softmax, PV."""
    q = q_ref[0, 0]                       # (S, d) bf16
    k = k_ref[0, 0]                       # (S, d) bf16
    v = v_ref[0, 0]                       # (S, d) bf16
    amask = m_ref[0]                      # (1, S) f32 additive: 0 keep / -1e4

    # Contraction over the trailing dim (q @ k^T) avoids any in-kernel
    # transpose.  NOTE: d < 128 (e.g. 64 in real BERT) underuses MXU lanes;
    # packing two heads per block would double utilization — accepted here.
    s = lax.dot_general(q, k, (((1,), (1,)), ((), ())),
                        preferred_element_type=jnp.float32) * scale
    s = s + amask
    m = jnp.max(s, axis=-1, keepdims=True)
    p = jnp.exp(s - m)
    p = p * pl.reciprocal(jnp.sum(p, axis=-1, keepdims=True), approx=True)
    o_ref[0, 0] = jnp.dot(p.astype(v.dtype), v,
                          preferred_element_type=jnp.float32).astype(o_ref.dtype)


def multi_head_attention(q, k, v, amask):
    """q,k,v head-major (B, nh, S, d); returns context in the same layout."""
    B, nh, S, d = q.shape
    scale = 1.0 / math.sqrt(d)
    head_spec = pl.BlockSpec((1, 1, S, d), lambda b, h: (b, h, 0, 0))
    kernel = functools.partial(_mha_kernel, scale=scale)
    # TODO(synk): add a KV grid axis + online softmax for very long S.
    return pl.pallas_call(
        kernel,
        out_shape=jax.ShapeDtypeStruct((B, nh, S, d), jnp.bfloat16),
        grid=(B, nh),
        in_specs=[head_spec, head_spec, head_spec,
                  pl.BlockSpec((1, 1, S), lambda b, h: (b, 0, 0))],
        out_specs=head_spec,
        compiler_params=_params("parallel", "parallel"),
    )(q, k, v, amask)


# ------------------------- parameter initialization ------------------------

def init_params(key, cfg):
    H = cfg["hidden_size"]
    I = cfg["intermediate_size"]
    C = cfg["class_num"]
    nh = cfg["num_heads"]
    d = H // nh
    C_pad = ((C + 127) // 128) * 128      # lane-aligned classifier output
    std = 0.02

    def norm_f32(key, shape):
        return (std * jax.random.normal(key, shape)).astype(jnp.float32)

    def norm_bf16(key, shape):
        return (std * jax.random.normal(key, shape)).astype(jnp.bfloat16)

    keys = iter(jax.random.split(key, 8 + 8 * cfg["num_layers"]))

    cls_w = norm_bf16(next(keys), (H, C))
    params = {
        "word_emb": norm_f32(next(keys), (cfg["vocab_size"], H)),
        "pos_emb": norm_f32(next(keys), (cfg["max_position"], H)),
        "type_emb": norm_f32(next(keys), (cfg["type_vocab_size"], H)),
        "emb_ln_g": jnp.ones((H,), jnp.float32),
        "emb_ln_b": jnp.zeros((H,), jnp.float32),
        # zero-padded to a 128-lane multiple so output stores are unmasked.
        "cls_w_pad": jnp.pad(cls_w, ((0, 0), (0, C_pad - C))),
        "cls_b_pad": jnp.zeros((C_pad,), jnp.float32),
        "layers": [],
    }
    for _ in range(cfg["num_layers"]):
        wq = norm_bf16(next(keys), (H, H))
        wk = norm_bf16(next(keys), (H, H))
        wv = norm_bf16(next(keys), (H, H))
        # One-time column permutation -> head-major fused QKV weight (nh,H,3d):
        # the projection GEMM then emits q/k/v already split per head, so the
        # per-layer XLA slices / head transposes disappear.
        wqkv_hm = jnp.stack(
            [jnp.concatenate([wq[:, h * d:(h + 1) * d],
                              wk[:, h * d:(h + 1) * d],
                              wv[:, h * d:(h + 1) * d]], axis=1)
             for h in range(nh)], axis=0)
        layer = {
            "wqkv_hm": wqkv_hm,                                   # (nh, H, 3d)
            "bqkv_hm": jnp.zeros((nh, 3, d), jnp.float32),
            "wo": norm_bf16(next(keys), (H, H)), "bo": jnp.zeros((H,), jnp.float32),
            "ln1_g": jnp.ones((H,), jnp.float32), "ln1_b": jnp.zeros((H,), jnp.float32),
            "w1": norm_bf16(next(keys), (H, I)), "b1": jnp.zeros((I,), jnp.float32),
            "w2": norm_bf16(next(keys), (I, H)), "b2": jnp.zeros((H,), jnp.float32),
            "ln2_g": jnp.ones((H,), jnp.float32), "ln2_b": jnp.zeros((H,), jnp.float32),
        }
        params["layers"].append(layer)
    return params


# -------------------------------- forward ----------------------------------

def torch_model_forward(params, input_ids, attention_mask, token_type_ids, cfg):
    """Equivalent of TorchModel.forward(input_ids, attention_mask, token_type_ids)
    with labels=None and use_crf=False -> returns logits (B, S, class_num)."""
    B, S = input_ids.shape
    H = cfg["hidden_size"]
    C = cfg["class_num"]

    # --- BERT embeddings (gathers are glue; LayerNorm is a Pallas kernel) ---
    emb = (jnp.take(params["word_emb"], input_ids, axis=0)
           + params["pos_emb"][None, :S, :]
           + jnp.take(params["type_emb"], token_type_ids, axis=0))
    x = layernorm(emb.reshape(B * S, H),
                  params["emb_ln_g"], params["emb_ln_b"])          # (B*S, H) bf16

    # HF-style additive attention mask: (B, 1, S), 0 keep / -10000 masked.
    amask = ((1.0 - attention_mask.astype(jnp.float32)) * -10000.0)[:, None, :]

    # --- transformer encoder layers ---
    for layer in params["layers"]:
        xf = x                                                     # (B*S, H) bf16
        # fused QKV projection emitting head-major q/k/v directly
        qh, kh, vh = qkv_projection(xf, layer["wqkv_hm"], layer["bqkv_hm"], B, S)
        ctx = multi_head_attention(qh, kh, vh, amask)              # (B, nh, S, d)
        # single head-major -> token-major transpose per layer (layout glue);
        # the output-projection GEMM then contracts the full H (100% MXU depth).
        attn = ctx.transpose(0, 2, 1, 3).reshape(B * S, H)
        # attention output projection fused with residual-add + LayerNorm
        x1 = linear_res_ln(attn, layer["wo"], layer["bo"],
                           xf, layer["ln1_g"], layer["ln1_b"])     # (B*S, H) bf16
        # FFN: GELU fused into the first GEMM, residual+LN fused into the second
        ff = linear(x1, layer["w1"], layer["b1"], activation="gelu")
        x = linear_res_ln(ff, layer["w2"], layer["b2"],
                          x1, layer["ln2_g"], layer["ln2_b"])      # (B*S, H) bf16

    # --- classifier head (nn.Linear(hidden_size, class_num)), lane-padded ---
    logits_pad = linear(x, params["cls_w_pad"], params["cls_b_pad"],
                        out_dtype=jnp.float32, weight_buffers=3)   # (B*S, C_pad)
    logits = logits_pad[:, :C].reshape(B, S, C)
    return logits


# --------------------------------- main -------------------------------------

if __name__ == "__main__":
    cfg = {
        "vocab_size": 100,
        "hidden_size": 32,
        "num_heads": 2,
        "intermediate_size": 64,
        "num_layers": 2,
        "max_position": 64,
        "type_vocab_size": 2,
        "class_num": 9,
        "use_crf": False,
    }
    B, S = 2, 8

    key = jax.random.PRNGKey(0)
    k_param, k_ids = jax.random.split(key)
    params = init_params(k_param, cfg)

    input_ids = jax.random.randint(k_ids, (B, S), 0, cfg["vocab_size"], dtype=jnp.int32)
    attention_mask = jnp.ones((B, S), dtype=jnp.int32).at[1, 6:].set(0)  # pad tail of row 1
    token_type_ids = jnp.zeros((B, S), dtype=jnp.int32)

    fwd = jax.jit(functools.partial(torch_model_forward, cfg=cfg))
    logits = fwd(params, input_ids, attention_mask, token_type_ids)
    jax.block_until_ready(logits)

    assert logits.shape == (B, S, cfg["class_num"])
    assert bool(jnp.all(jnp.isfinite(logits)))
    print("KERNEL_OK")
</pallas_src>

<mosaic_0001>
module attributes {stable_mosaic.version = 11 : i64} {
  func.func @_ln_kernel(%arg0: i32, %arg1: memref<16x32xbf16, #tpu.memory_space<vmem>>, %arg2: memref<1x32xf32, #tpu.memory_space<vmem>>, %arg3: memref<1x32xf32, #tpu.memory_space<vmem>>, %arg4: memref<16x32xbf16, #tpu.memory_space<vmem>>) attributes {dimension_semantics = [#tpu.dimension_semantics<parallel>], iteration_bounds = array<i64: 1>, scalar_prefetch = 0 : i64, scratch_operands = 0 : i64, tpu.core_type = #tpu.core_type<tc>, window_params = [{transform_indices = @transform_0, window_bounds = array<i64: 16, 32>}, {pipeline_mode = #tpu.pipeline_mode<synchronous>, transform_indices = @transform_1, window_bounds = array<i64: 1, 32>}, {pipeline_mode = #tpu.pipeline_mode<synchronous>, transform_indices = @transform_2, window_bounds = array<i64: 1, 32>}, {transform_indices = @transform_3, window_bounds = array<i64: 16, 32>}]} {
    %c0 = arith.constant 0 : index
    %c0_0 = arith.constant 0 : index
    %0 = vector.load %arg1[%c0, %c0_0] : memref<16x32xbf16, #tpu.memory_space<vmem>>, vector<16x32xbf16>
    %1 = arith.extf %0 : vector<16x32xbf16> to vector<16x32xf32>
    %cst = arith.constant dense<0.000000e+00> : vector<16xf32>
    %2 = vector.multi_reduction <add>, %1, %cst [1] : vector<16x32xf32> to vector<16xf32>
    %3 = vector.shape_cast %2 : vector<16xf32> to vector<16x1xf32>
    %cst_1 = arith.constant 3.200000e+01 : f32
    %4 = vector.broadcast %cst_1 : f32 to vector<16x1xf32>
    %5 = arith.divf %3, %4 : vector<16x1xf32>
    %6 = vector.broadcast %5 : vector<16x1xf32> to vector<16x32xf32>
    %7 = arith.subf %1, %6 : vector<16x32xf32>
    %8 = vector.broadcast %5 : vector<16x1xf32> to vector<16x32xf32>
    %9 = arith.subf %1, %8 : vector<16x32xf32>
    %10 = arith.mulf %7, %9 : vector<16x32xf32>
    %cst_2 = arith.constant dense<0.000000e+00> : vector<16xf32>
    %11 = vector.multi_reduction <add>, %10, %cst_2 [1] : vector<16x32xf32> to vector<16xf32>
    %12 = vector.shape_cast %11 : vector<16xf32> to vector<16x1xf32>
    %cst_3 = arith.constant 3.200000e+01 : f32
    %13 = vector.broadcast %cst_3 : f32 to vector<16x1xf32>
    %14 = arith.divf %12, %13 : vector<16x1xf32>
    %15 = vector.broadcast %5 : vector<16x1xf32> to vector<16x32xf32>
    %16 = arith.subf %1, %15 : vector<16x32xf32>
    %cst_4 = arith.constant 9.99999996E-13 : f32
    %17 = vector.broadcast %cst_4 : f32 to vector<16x1xf32>
    %18 = arith.addf %14, %17 : vector<16x1xf32>
    %19 = math.rsqrt %18 : vector<16x1xf32>
    %20 = vector.broadcast %19 : vector<16x1xf32> to vector<16x32xf32>
    %21 = arith.mulf %16, %20 : vector<16x32xf32>
    %c0_5 = arith.constant 0 : index
    %c0_6 = arith.constant 0 : index
    %22 = vector.load %arg2[%c0_5, %c0_6] : memref<1x32xf32, #tpu.memory_space<vmem>>, vector<1x32xf32>
    %23 = vector.broadcast %22 : vector<1x32xf32> to vector<16x32xf32>
    %24 = arith.mulf %21, %23 : vector<16x32xf32>
    %c0_7 = arith.constant 0 : index
    %c0_8 = arith.constant 0 : index
    %25 = vector.load %arg3[%c0_7, %c0_8] : memref<1x32xf32, #tpu.memory_space<vmem>>, vector<1x32xf32>
    %26 = vector.broadcast %25 : vector<1x32xf32> to vector<16x32xf32>
    %27 = arith.addf %24, %26 : vector<16x32xf32>
    %28 = arith.truncf %27 : vector<16x32xf32> to vector<16x32xbf16>
    %c0_9 = arith.constant 0 : index
    %c0_10 = arith.constant 0 : index
    %29 = vector.load %arg4[%c0_9, %c0_10] : memref<16x32xbf16, #tpu.memory_space<vmem>>, vector<16x32xbf16>
    tpu.vector_store %arg4[%c0_9, %c0_10], %28 {strides = array<i32>} : memref<16x32xbf16, #tpu.memory_space<vmem>>, vector<16x32xbf16>,
    return
  }
  func.func @transform_0(%arg0: i32) -> (i32, i32) {
    %c0_i32 = arith.constant 0 : i32
    %c0_i32_0 = arith.constant 0 : i32
    return %arg0, %c0_i32 : i32, i32
  }
  func.func @transform_1(%arg0: i32) -> (i32, i32) {
    %c0_i32 = arith.constant 0 : i32
    %c0_i32_0 = arith.constant 0 : i32
    %c0_i32_1 = arith.constant 0 : i32
    return %c0_i32, %c0_i32_0 : i32, i32
  }
  func.func @transform_2(%arg0: i32) -> (i32, i32) {
    %c0_i32 = arith.constant 0 : i32
    %c0_i32_0 = arith.constant 0 : i32
    %c0_i32_1 = arith.constant 0 : i32
    return %c0_i32, %c0_i32_0 : i32, i32
  }
  func.func @transform_3(%arg0: i32) -> (i32, i32) {
    %c0_i32 = arith.constant 0 : i32
    %c0_i32_0 = arith.constant 0 : i32
    return %arg0, %c0_i32 : i32, i32
  }
}

module attributes {stable_mosaic.version = 11 : i64} {
  func.func @_qkv_kernel(%arg0: i32, %arg1: i32, %arg2: i32, %arg3: i32, %arg4: memref<1x8x32xbf16, #tpu.memory_space<vmem>>, %arg5: memref<1x32x48xbf16, #tpu.memory_space<vmem>>, %arg6: memref<1x3x16xf32, #tpu.memory_space<vmem>>, %arg7: memref<1x1x8x16xbf16, #tpu.memory_space<vmem>>, %arg8: memref<1x1x8x16xbf16, #tpu.memory_space<vmem>>, %arg9: memref<1x1x8x16xbf16, #tpu.memory_space<vmem>>, %arg10: memref<8x48xf32, #tpu.memory_space<vmem>>) attributes {dimension_semantics = [#tpu.dimension_semantics<parallel>, #tpu.dimension_semantics<parallel>, #tpu.dimension_semantics<parallel>, #tpu.dimension_semantics<arbitrary>], iteration_bounds = array<i64: 2, 1, 2, 1>, scalar_prefetch = 0 : i64, scratch_operands = 1 : i64, tpu.core_type = #tpu.core_type<tc>, window_params = [{transform_indices = @transform_0, window_bounds = array<i64: 1, 8, 32>}, {transform_indices = @transform_1, window_bounds = array<i64: 1, 32, 48>}, {transform_indices = @transform_2, window_bounds = array<i64: 1, 3, 16>}, {transform_indices = @transform_3, window_bounds = array<i64: 1, 1, 8, 16>}, {transform_indices = @transform_4, window_bounds = array<i64: 1, 1, 8, 16>}, {transform_indices = @transform_5, window_bounds = array<i64: 1, 1, 8, 16>}]} {
    %c0_i32 = arith.constant 0 : i32
    %0 = arith.cmpi eq, %arg3, %c0_i32 : i32
    %1 = arith.extui %0 : i1 to i32
    %c0_i32_0 = arith.constant 0 : i32
    %2 = arith.cmpi ne, %1, %c0_i32_0 : i32
    scf.if %2 {
      %cst_12 = arith.constant 0.000000e+00 : f32
      %14 = vector.broadcast %cst_12 : f32 to vector<8x48xf32>
      %c0_13 = arith.constant 0 : index
      %c0_14 = arith.constant 0 : index
      %15 = vector.load %arg10[%c0_13, %c0_14] : memref<8x48xf32, #tpu.memory_space<vmem>>, vector<8x48xf32>
      tpu.vector_store %arg10[%c0_13, %c0_14], %14 {strides = array<i32>} : memref<8x48xf32, #tpu.memory_space<vmem>>, vector<8x48xf32>,
    } else {
    }
    %c0 = arith.constant 0 : index
    %c0_1 = arith.constant 0 : index
    %3 = vector.load %arg10[%c0, %c0_1] : memref<8x48xf32, #tpu.memory_space<vmem>>, vector<8x48xf32>
    %c0_2 = arith.constant 0 : index
    %c0_3 = arith.constant 0 : index
    %c0_4 = arith.constant 0 : index
    %4 = vector.load %arg4[%c0_2, %c0_3, %c0_4] : memref<1x8x32xbf16, #tpu.memory_space<vmem>>, vector<1x8x32xbf16>
    %5 = vector.shape_cast %4 : vector<1x8x32xbf16> to vector<8x32xbf16>
    %c0_5 = arith.constant 0 : index
    %c0_6 = arith.constant 0 : index
    %c0_7 = arith.constant 0 : index
    %6 = vector.load %arg5[%c0_5, %c0_6, %c0_7] : memref<1x32x48xbf16, #tpu.memory_space<vmem>>, vector<1x32x48xbf16>
    %7 = vector.shape_cast %6 : vector<1x32x48xbf16> to vector<32x48xbf16>
    %cst = arith.constant dense<0.000000e+00> : vector<8x48xf32>
    %8 = tpu.matmul %5, %7, %cst {dimension_numbers = #tpu.dot_dimension_numbers<[1], [0], [0], [1], [0, 0, 1, 1], [], []>} : vector<8x32xbf16>, vector<32x48xbf16>, vector<8x48xf32> -> vector<8x48xf32>
    %9 = arith.addf %3, %8 : vector<8x48xf32>
    %c0_8 = arith.constant 0 : index
    %c0_9 = arith.constant 0 : index
    %10 = vector.load %arg10[%c0_8, %c0_9] : memref<8x48xf32, #tpu.memory_space<vmem>>, vector<8x48xf32>
    tpu.vector_store %arg10[%c0_8, %c0_9], %9 {strides = array<i32>} : memref<8x48xf32, #tpu.memory_space<vmem>>, vector<8x48xf32>,
    %c0_i32_10 = arith.constant 0 : i32
    %11 = arith.cmpi eq, %arg3, %c0_i32_10 : i32
    %12 = arith.extui %11 : i1 to i32
    %c0_i32_11 = arith.constant 0 : i32
    %13 = arith.cmpi ne, %12, %c0_i32_11 : i32
    scf.if %13 {
      %c0_12 = arith.constant 0 : index
      %c0_13 = arith.constant 0 : index
      %c0_14 = arith.constant 0 : index
      %14 = vector.load %arg6[%c0_12, %c0_13, %c0_14] : memref<1x3x16xf32, #tpu.memory_space<vmem>>, vector<1x3x16xf32>
      %15 = vector.shape_cast %14 : vector<1x3x16xf32> to vector<3x16xf32>
      %c0_15 = arith.constant 0 : index
      %c0_16 = arith.constant 0 : index
      %16 = vector.load %arg10[%c0_15, %c0_16] : memref<8x48xf32, #tpu.memory_space<vmem>>, vector<8x16xf32>
      %17 = vector.extract_strided_slice %15 {offsets = [0, 0], sizes = [1, 16], strides = [1, 1]} : vector<3x16xf32> to vector<1x16xf32>
      %18 = vector.shape_cast %17 : vector<1x16xf32> to vector<16xf32>
      %19 = vector.shape_cast %18 : vector<16xf32> to vector<1x16xf32>
      %20 = vector.broadcast %19 : vector<1x16xf32> to vector<8x16xf32>
      %21 = arith.addf %16, %20 : vector<8x16xf32>
      %22 = arith.truncf %21 : vector<8x16xf32> to vector<8x16xbf16>
      %c0_17 = arith.constant 0 : index
      %c0_18 = arith.constant 0 : index
      %c0_19 = arith.constant 0 : index
      %c0_20 = arith.constant 0 : index
      %23 = vector.load %arg7[%c0_17, %c0_18, %c0_19, %c0_20] : memref<1x1x8x16xbf16, #tpu.memory_space<vmem>>, vector<1x1x8x16xbf16>
      %24 = vector.shape_cast %23 : vector<1x1x8x16xbf16> to vector<8x16xbf16>
      %25 = vector.shape_cast %22 : vector<8x16xbf16> to vector<1x1x8x16xbf16>
      tpu.vector_store %arg7[%c0_17, %c0_18, %c0_19, %c0_20], %25 {strides = array<i32>} : memref<1x1x8x16xbf16, #tpu.memory_space<vmem>>, vector<1x1x8x16xbf16>,
      %c0_21 = arith.constant 0 : index
      %c16 = arith.constant 16 : index
      %26 = vector.load %arg10[%c0_21, %c16] : memref<8x48xf32, #tpu.memory_space<vmem>>, vector<8x16xf32>
      %27 = vector.extract_strided_slice %15 {offsets = [1, 0], sizes = [1, 16], strides = [1, 1]} : vector<3x16xf32> to vector<1x16xf32>
      %28 = vector.shape_cast %27 : vector<1x16xf32> to vector<16xf32>
      %29 = vector.shape_cast %28 : vector<16xf32> to vector<1x16xf32>
      %30 = vector.broadcast %29 : vector<1x16xf32> to vector<8x16xf32>
      %31 = arith.addf %26, %30 : vector<8x16xf32>
      %32 = arith.truncf %31 : vector<8x16xf32> to vector<8x16xbf16>
      %c0_22 = arith.constant 0 : index
      %c0_23 = arith.constant 0 : index
      %c0_24 = arith.constant 0 : index
      %c0_25 = arith.constant 0 : index
      %33 = vector.load %arg8[%c0_22, %c0_23, %c0_24, %c0_25] : memref<1x1x8x16xbf16, #tpu.memory_space<vmem>>, vector<1x1x8x16xbf16>
      %34 = vector.shape_cast %33 : vector<1x1x8x16xbf16> to vector<8x16xbf16>
      %35 = vector.shape_cast %32 : vector<8x16xbf16> to vector<1x1x8x16xbf16>
      tpu.vector_store %arg8[%c0_22, %c0_23, %c0_24, %c0_25], %35 {strides = array<i32>} : memref<1x1x8x16xbf16, #tpu.memory_space<vmem>>, vector<1x1x8x16xbf16>,
      %c0_26 = arith.constant 0 : index
      %c32 = arith.constant 32 : index
      %36 = vector.load %arg10[%c0_26, %c32] : memref<8x48xf32, #tpu.memory_space<vmem>>, vector<8x16xf32>
      %37 = vector.extract_strided_slice %15 {offsets = [2, 0], sizes = [1, 16], strides = [1, 1]} : vector<3x16xf32> to vector<1x16xf32>
      %38 = vector.shape_cast %37 : vector<1x16xf32> to vector<16xf32>
      %39 = vector.shape_cast %38 : vector<16xf32> to vector<1x16xf32>
      %40 = vector.broadcast %39 : vector<1x16xf32> to vector<8x16xf32>
      %41 = arith.addf %36, %40 : vector<8x16xf32>
      %42 = arith.truncf %41 : vector<8x16xf32> to vector<8x16xbf16>
      %c0_27 = arith.constant 0 : index
      %c0_28 = arith.constant 0 : index
      %c0_29 = arith.constant 0 : index
      %c0_30 = arith.constant 0 : index
      %43 = vector.load %arg9[%c0_27, %c0_28, %c0_29, %c0_30] : memref<1x1x8x16xbf16, #tpu.memory_space<vmem>>, vector<1x1x8x16xbf16>
      %44 = vector.shape_cast %43 : vector<1x1x8x16xbf16> to vector<8x16xbf16>
      %45 = vector.shape_cast %42 : vector<8x16xbf16> to vector<1x1x8x16xbf16>
      tpu.vector_store %arg9[%c0_27, %c0_28, %c0_29, %c0_30], %45 {strides = array<i32>} : memref<1x1x8x16xbf16, #tpu.memory_space<vmem>>, vector<1x1x8x16xbf16>,
    } else {
    }
    return
  }
  func.func @transform_0(%arg0: i32, %arg1: i32, %arg2: i32, %arg3: i32) -> (i32, i32, i32) {
    %c0_i32 = arith.constant 0 : i32
    return %arg0, %arg1, %arg3 : i32, i32, i32
  }
  func.func @transform_1(%arg0: i32, %arg1: i32, %arg2: i32, %arg3: i32) -> (i32, i32, i32) {
    %c0_i32 = arith.constant 0 : i32
    %c0_i32_0 = arith.constant 0 : i32
    return %arg2, %arg3, %c0_i32 : i32, i32, i32
  }
  func.func @transform_2(%arg0: i32, %arg1: i32, %arg2: i32, %arg3: i32) -> (i32, i32, i32) {
    %c0_i32 = arith.constant 0 : i32
    %c0_i32_0 = arith.constant 0 : i32
    %c0_i32_1 = arith.constant 0 : i32
    return %arg2, %c0_i32, %c0_i32_0 : i32, i32, i32
  }
  func.func @transform_3(%arg0: i32, %arg1: i32, %arg2: i32, %arg3: i32) -> (i32, i32, i32, i32) {
    %c0_i32 = arith.constant 0 : i32
    %c0_i32_0 = arith.constant 0 : i32
    return %arg0, %arg2, %arg1, %c0_i32 : i32, i32, i32, i32
  }
  func.func @transform_4(%arg0: i32, %arg1: i32, %arg2: i32, %arg3: i32) -> (i32, i32, i32, i32) {
    %c0_i32 = arith.constant 0 : i32
    %c0_i32_0 = arith.constant 0 : i32
    return %arg0, %arg2, %arg1, %c0_i32 : i32, i32, i32, i32
  }
  func.func @transform_5(%arg0: i32, %arg1: i32, %arg2: i32, %arg3: i32) -> (i32, i32, i32, i32) {
    %c0_i32 = arith.constant 0 : i32
    %c0_i32_0 = arith.constant 0 : i32
    return %arg0, %arg2, %arg1, %c0_i32 : i32, i32, i32, i32
  }
}

module attributes {stable_mosaic.version = 11 : i64} {
  func.func @_mha_kernel(%arg0: i32, %arg1: i32, %arg2: memref<1x1x8x16xbf16, #tpu.memory_space<vmem>>, %arg3: memref<1x1x8x16xbf16, #tpu.memory_space<vmem>>, %arg4: memref<1x1x8x16xbf16, #tpu.memory_space<vmem>>, %arg5: memref<1x1x8xf32, #tpu.memory_space<vmem>>, %arg6: memref<1x1x8x16xbf16, #tpu.memory_space<vmem>>) attributes {dimension_semantics = [#tpu.dimension_semantics<parallel>, #tpu.dimension_semantics<parallel>], iteration_bounds = array<i64: 2, 2>, scalar_prefetch = 0 : i64, scratch_operands = 0 : i64, tpu.core_type = #tpu.core_type<tc>, window_params = [{transform_indices = @transform_0, window_bounds = array<i64: 1, 1, 8, 16>}, {transform_indices = @transform_1, window_bounds = array<i64: 1, 1, 8, 16>}, {transform_indices = @transform_2, window_bounds = array<i64: 1, 1, 8, 16>}, {transform_indices = @transform_3, window_bounds = array<i64: 1, 1, 8>}, {transform_indices = @transform_4, window_bounds = array<i64: 1, 1, 8, 16>}]} {
    %c0 = arith.constant 0 : index
    %c0_0 = arith.constant 0 : index
    %c0_1 = arith.constant 0 : index
    %c0_2 = arith.constant 0 : index
    %0 = vector.load %arg2[%c0, %c0_0, %c0_1, %c0_2] : memref<1x1x8x16xbf16, #tpu.memory_space<vmem>>, vector<1x1x8x16xbf16>
    %1 = vector.shape_cast %0 : vector<1x1x8x16xbf16> to vector<8x16xbf16>
    %c0_3 = arith.constant 0 : index
    %c0_4 = arith.constant 0 : index
    %c0_5 = arith.constant 0 : index
    %c0_6 = arith.constant 0 : index
    %2 = vector.load %arg3[%c0_3, %c0_4, %c0_5, %c0_6] : memref<1x1x8x16xbf16, #tpu.memory_space<vmem>>, vector<1x1x8x16xbf16>
    %3 = vector.shape_cast %2 : vector<1x1x8x16xbf16> to vector<8x16xbf16>
    %c0_7 = arith.constant 0 : index
    %c0_8 = arith.constant 0 : index
    %c0_9 = arith.constant 0 : index
    %c0_10 = arith.constant 0 : index
    %4 = vector.load %arg4[%c0_7, %c0_8, %c0_9, %c0_10] : memref<1x1x8x16xbf16, #tpu.memory_space<vmem>>, vector<1x1x8x16xbf16>
    %5 = vector.shape_cast %4 : vector<1x1x8x16xbf16> to vector<8x16xbf16>
    %c0_11 = arith.constant 0 : index
    %c0_12 = arith.constant 0 : index
    %c0_13 = arith.constant 0 : index
    %6 = vector.load %arg5[%c0_11, %c0_12, %c0_13] : memref<1x1x8xf32, #tpu.memory_space<vmem>>, vector<1x1x8xf32>
    %7 = vector.shape_cast %6 : vector<1x1x8xf32> to vector<1x8xf32>
    %cst = arith.constant dense<0.000000e+00> : vector<8x8xf32>
    %8 = tpu.matmul %1, %3, %cst {dimension_numbers = #tpu.dot_dimension_numbers<[1], [1], [0], [0], [0, 0, 1, 0], [], []>} : vector<8x16xbf16>, vector<8x16xbf16>, vector<8x8xf32> -> vector<8x8xf32>
    %cst_14 = arith.constant 2.500000e-01 : f32
    %9 = vector.broadcast %cst_14 : f32 to vector<8x8xf32>
    %10 = arith.mulf %8, %9 : vector<8x8xf32>
    %11 = vector.broadcast %7 : vector<1x8xf32> to vector<8x8xf32>
    %12 = arith.addf %10, %11 : vector<8x8xf32>
    %cst_15 = arith.constant dense<0xFF800000> : vector<8xf32>
    %13 = vector.multi_reduction <maximumf>, %12, %cst_15 [1] : vector<8x8xf32> to vector<8xf32>
    %14 = vector.shape_cast %13 : vector<8xf32> to vector<8x1xf32>
    %15 = vector.broadcast %14 : vector<8x1xf32> to vector<8x8xf32>
    %16 = arith.subf %12, %15 : vector<8x8xf32>
    %17 = math.exp %16 : vector<8x8xf32>
    %cst_16 = arith.constant dense<0.000000e+00> : vector<8xf32>
    %18 = vector.multi_reduction <add>, %17, %cst_16 [1] : vector<8x8xf32> to vector<8xf32>
    %19 = vector.shape_cast %18 : vector<8xf32> to vector<8x1xf32>
    %20 = tpu.reciprocal %19 {approx = true} : vector<8x1xf32> -> vector<8x1xf32>
    %21 = vector.broadcast %20 : vector<8x1xf32> to vector<8x8xf32>
    %22 = arith.mulf %17, %21 : vector<8x8xf32>
    %23 = arith.truncf %22 : vector<8x8xf32> to vector<8x8xbf16>
    %cst_17 = arith.constant dense<0.000000e+00> : vector<8x16xf32>
    %24 = tpu.matmul %23, %5, %cst_17 {dimension_numbers = #tpu.dot_dimension_numbers<[1], [0], [0], [1], [0, 0, 1, 1], [], []>} : vector<8x8xbf16>, vector<8x16xbf16>, vector<8x16xf32> -> vector<8x16xf32>
    %25 = arith.truncf %24 : vector<8x16xf32> to vector<8x16xbf16>
    %c0_18 = arith.constant 0 : index
    %c0_19 = arith.constant 0 : index
    %c0_20 = arith.constant 0 : index
    %c0_21 = arith.constant 0 : index
    %26 = vector.load %arg6[%c0_18, %c0_19, %c0_20, %c0_21] : memref<1x1x8x16xbf16, #tpu.memory_space<vmem>>, vector<1x1x8x16xbf16>
    %27 = vector.shape_cast %26 : vector<1x1x8x16xbf16> to vector<8x16xbf16>
    %28 = vector.shape_cast %25 : vector<8x16xbf16> to vector<1x1x8x16xbf16>
    tpu.vector_store %arg6[%c0_18, %c0_19, %c0_20, %c0_21], %28 {strides = array<i32>} : memref<1x1x8x16xbf16, #tpu.memory_space<vmem>>, vector<1x1x8x16xbf16>,
    return
  }
  func.func @transform_0(%arg0: i32, %arg1: i32) -> (i32, i32, i32, i32) {
    %c0_i32 = arith.constant 0 : i32
    %c0_i32_0 = arith.constant 0 : i32
    %c0_i32_1 = arith.constant 0 : i32
    return %arg0, %arg1, %c0_i32, %c0_i32_0 : i32, i32, i32, i32
  }
  func.func @transform_1(%arg0: i32, %arg1: i32) -> (i32, i32, i32, i32) {
    %c0_i32 = arith.constant 0 : i32
    %c0_i32_0 = arith.constant 0 : i32
    %c0_i32_1 = arith.constant 0 : i32
    return %arg0, %arg1, %c0_i32, %c0_i32_0 : i32, i32, i32, i32
  }
  func.func @transform_2(%arg0: i32, %arg1: i32) -> (i32, i32, i32, i32) {
    %c0_i32 = arith.constant 0 : i32
    %c0_i32_0 = arith.constant 0 : i32
    %c0_i32_1 = arith.constant 0 : i32
    return %arg0, %arg1, %c0_i32, %c0_i32_0 : i32, i32, i32, i32
  }
  func.func @transform_3(%arg0: i32, %arg1: i32) -> (i32, i32, i32) {
    %c0_i32 = arith.constant 0 : i32
    %c0_i32_0 = arith.constant 0 : i32
    %c0_i32_1 = arith.constant 0 : i32
    return %arg0, %c0_i32, %c0_i32_0 : i32, i32, i32
  }
  func.func @transform_4(%arg0: i32, %arg1: i32) -> (i32, i32, i32, i32) {
    %c0_i32 = arith.constant 0 : i32
    %c0_i32_0 = arith.constant 0 : i32
    %c0_i32_1 = arith.constant 0 : i32
    return %arg0, %arg1, %c0_i32, %c0_i32_0 : i32, i32, i32, i32
  }
}

module attributes {stable_mosaic.version = 11 : i64} {
  func.func @_gemm_res_ln_kernel(%arg0: i32, %arg1: i32, %arg2: memref<16x32xbf16, #tpu.memory_space<vmem>>, %arg3: memref<32x32xbf16, #tpu.memory_space<vmem>>, %arg4: memref<1x32xf32, #tpu.memory_space<vmem>>, %arg5: memref<16x32xbf16, #tpu.memory_space<vmem>>, %arg6: memref<1x32xf32, #tpu.memory_space<vmem>>, %arg7: memref<1x32xf32, #tpu.memory_space<vmem>>, %arg8: memref<16x32xbf16, #tpu.memory_space<vmem>>, %arg9: memref<16x32xf32, #tpu.memory_space<vmem>>) attributes {dimension_semantics = [#tpu.dimension_semantics<parallel>, #tpu.dimension_semantics<arbitrary>], iteration_bounds = array<i64: 1, 1>, scalar_prefetch = 0 : i64, scratch_operands = 1 : i64, tpu.core_type = #tpu.core_type<tc>, window_params = [{transform_indices = @transform_0, window_bounds = array<i64: 16, 32>}, {transform_indices = @transform_1, window_bounds = array<i64: 32, 32>}, {pipeline_mode = #tpu.pipeline_mode<synchronous>, transform_indices = @transform_2, window_bounds = array<i64: 1, 32>}, {transform_indices = @transform_3, window_bounds = array<i64: 16, 32>}, {pipeline_mode = #tpu.pipeline_mode<synchronous>, transform_indices = @transform_4, window_bounds = array<i64: 1, 32>}, {pipeline_mode = #tpu.pipeline_mode<synchronous>, transform_indices = @transform_5, window_bounds = array<i64: 1, 32>}, {transform_indices = @transform_6, window_bounds = array<i64: 16, 32>}]} {
    %c0_i32 = arith.constant 0 : i32
    %0 = arith.cmpi eq, %arg1, %c0_i32 : i32
    %1 = arith.extui %0 : i1 to i32
    %c0_i32_0 = arith.constant 0 : i32
    %2 = arith.cmpi ne, %1, %c0_i32_0 : i32
    scf.if %2 {
      %cst_10 = arith.constant 0.000000e+00 : f32
      %12 = vector.broadcast %cst_10 : f32 to vector<16x32xf32>
      %c0_11 = arith.constant 0 : index
      %c0_12 = arith.constant 0 : index
      %13 = vector.load %arg9[%c0_11, %c0_12] : memref<16x32xf32, #tpu.memory_space<vmem>>, vector<16x32xf32>
      tpu.vector_store %arg9[%c0_11, %c0_12], %12 {strides = array<i32>} : memref<16x32xf32, #tpu.memory_space<vmem>>, vector<16x32xf32>,
    } else {
    }
    %c0 = arith.constant 0 : index
    %c0_1 = arith.constant 0 : index
    %3 = vector.load %arg9[%c0, %c0_1] : memref<16x32xf32, #tpu.memory_space<vmem>>, vector<16x32xf32>
    %c0_2 = arith.constant 0 : index
    %c0_3 = arith.constant 0 : index
    %4 = vector.load %arg2[%c0_2, %c0_3] : memref<16x32xbf16, #tpu.memory_space<vmem>>, vector<16x32xbf16>
    %c0_4 = arith.constant 0 : index
    %c0_5 = arith.constant 0 : index
    %5 = vector.load %arg3[%c0_4, %c0_5] : memref<32x32xbf16, #tpu.memory_space<vmem>>, vector<32x32xbf16>
    %cst = arith.constant dense<0.000000e+00> : vector<16x32xf32>
    %6 = tpu.matmul %4, %5, %cst {dimension_numbers = #tpu.dot_dimension_numbers<[1], [0], [0], [1], [0, 0, 1, 1], [], []>} : vector<16x32xbf16>, vector<32x32xbf16>, vector<16x32xf32> -> vector<16x32xf32>
    %7 = arith.addf %3, %6 : vector<16x32xf32>
    %c0_6 = arith.constant 0 : index
    %c0_7 = arith.constant 0 : index
    %8 = vector.load %arg9[%c0_6, %c0_7] : memref<16x32xf32, #tpu.memory_space<vmem>>, vector<16x32xf32>
    tpu.vector_store %arg9[%c0_6, %c0_7], %7 {strides = array<i32>} : memref<16x32xf32, #tpu.memory_space<vmem>>, vector<16x32xf32>,
    %c0_i32_8 = arith.constant 0 : i32
    %9 = arith.cmpi eq, %arg1, %c0_i32_8 : i32
    %10 = arith.extui %9 : i1 to i32
    %c0_i32_9 = arith.constant 0 : i32
    %11 = arith.cmpi ne, %10, %c0_i32_9 : i32
    scf.if %11 {
      %c0_10 = arith.constant 0 : index
      %c0_11 = arith.constant 0 : index
      %12 = vector.load %arg9[%c0_10, %c0_11] : memref<16x32xf32, #tpu.memory_space<vmem>>, vector<16x32xf32>
      %c0_12 = arith.constant 0 : index
      %c0_13 = arith.constant 0 : index
      %13 = vector.load %arg4[%c0_12, %c0_13] : memref<1x32xf32, #tpu.memory_space<vmem>>, vector<1x32xf32>
      %14 = vector.broadcast %13 : vector<1x32xf32> to vector<16x32xf32>
      %15 = arith.addf %12, %14 : vector<16x32xf32>
      %c0_14 = arith.constant 0 : index
      %c0_15 = arith.constant 0 : index
      %16 = vector.load %arg5[%c0_14, %c0_15] : memref<16x32xbf16, #tpu.memory_space<vmem>>, vector<16x32xbf16>
      %17 = arith.extf %16 : vector<16x32xbf16> to vector<16x32xf32>
      %18 = arith.addf %15, %17 : vector<16x32xf32>
      %cst_16 = arith.constant dense<0.000000e+00> : vector<16xf32>
      %19 = vector.multi_reduction <add>, %18, %cst_16 [1] : vector<16x32xf32> to vector<16xf32>
      %20 = vector.shape_cast %19 : vector<16xf32> to vector<16x1xf32>
      %cst_17 = arith.constant 3.200000e+01 : f32
      %21 = vector.broadcast %cst_17 : f32 to vector<16x1xf32>
      %22 = arith.divf %20, %21 : vector<16x1xf32>
      %23 = vector.broadcast %22 : vector<16x1xf32> to vector<16x32xf32>
      %24 = arith.subf %18, %23 : vector<16x32xf32>
      %25 = vector.broadcast %22 : vector<16x1xf32> to vector<16x32xf32>
      %26 = arith.subf %18, %25 : vector<16x32xf32>
      %27 = arith.mulf %24, %26 : vector<16x32xf32>
      %cst_18 = arith.constant dense<0.000000e+00> : vector<16xf32>
      %28 = vector.multi_reduction <add>, %27, %cst_18 [1] : vector<16x32xf32> to vector<16xf32>
      %29 = vector.shape_cast %28 : vector<16xf32> to vector<16x1xf32>
      %cst_19 = arith.constant 3.200000e+01 : f32
      %30 = vector.broadcast %cst_19 : f32 to vector<16x1xf32>
      %31 = arith.divf %29, %30 : vector<16x1xf32>
      %32 = vector.broadcast %22 : vector<16x1xf32> to vector<16x32xf32>
      %33 = arith.subf %18, %32 : vector<16x32xf32>
      %cst_20 = arith.constant 9.99999996E-13 : f32
      %34 = vector.broadcast %cst_20 : f32 to vector<16x1xf32>
      %35 = arith.addf %31, %34 : vector<16x1xf32>
      %36 = math.rsqrt %35 : vector<16x1xf32>
      %37 = vector.broadcast %36 : vector<16x1xf32> to vector<16x32xf32>
      %38 = arith.mulf %33, %37 : vector<16x32xf32>
      %c0_21 = arith.constant 0 : index
      %c0_22 = arith.constant 0 : index
      %39 = vector.load %arg6[%c0_21, %c0_22] : memref<1x32xf32, #tpu.memory_space<vmem>>, vector<1x32xf32>
      %40 = vector.broadcast %39 : vector<1x32xf32> to vector<16x32xf32>
      %41 = arith.mulf %38, %40 : vector<16x32xf32>
      %c0_23 = arith.constant 0 : index
      %c0_24 = arith.constant 0 : index
      %42 = vector.load %arg7[%c0_23, %c0_24] : memref<1x32xf32, #tpu.memory_space<vmem>>, vector<1x32xf32>
      %43 = vector.broadcast %42 : vector<1x32xf32> to vector<16x32xf32>
      %44 = arith.addf %41, %43 : vector<16x32xf32>
      %45 = arith.truncf %44 : vector<16x32xf32> to vector<16x32xbf16>
      %c0_25 = arith.constant 0 : index
      %c0_26 = arith.constant 0 : index
      %46 = vector.load %arg8[%c0_25, %c0_26] : memref<16x32xbf16, #tpu.memory_space<vmem>>, vector<16x32xbf16>
      tpu.vector_store %arg8[%c0_25, %c0_26], %45 {strides = array<i32>} : memref<16x32xbf16, #tpu.memory_space<vmem>>, vector<16x32xbf16>,
    } else {
    }
    return
  }
  func.func @transform_0(%arg0: i32, %arg1: i32) -> (i32, i32) {
    %c0_i32 = arith.constant 0 : i32
    return %arg0, %arg1 : i32, i32
  }
  func.func @transform_1(%arg0: i32, %arg1: i32) -> (i32, i32) {
    %c0_i32 = arith.constant 0 : i32
    %c0_i32_0 = arith.constant 0 : i32
    return %arg1, %c0_i32 : i32, i32
  }
  func.func @transform_2(%arg0: i32, %arg1: i32) -> (i32, i32) {
    %c0_i32 = arith.constant 0 : i32
    %c0_i32_0 = arith.constant 0 : i32
    %c0_i32_1 = arith.constant 0 : i32
    return %c0_i32, %c0_i32_0 : i32, i32
  }
  func.func @transform_3(%arg0: i32, %arg1: i32) -> (i32, i32) {
    %c0_i32 = arith.constant 0 : i32
    %c0_i32_0 = arith.constant 0 : i32
    return %arg0, %c0_i32 : i32, i32
  }
  func.func @transform_4(%arg0: i32, %arg1: i32) -> (i32, i32) {
    %c0_i32 = arith.constant 0 : i32
    %c0_i32_0 = arith.constant 0 : i32
    %c0_i32_1 = arith.constant 0 : i32
    return %c0_i32, %c0_i32_0 : i32, i32
  }
  func.func @transform_5(%arg0: i32, %arg1: i32) -> (i32, i32) {
    %c0_i32 = arith.constant 0 : i32
    %c0_i32_0 = arith.constant 0 : i32
    %c0_i32_1 = arith.constant 0 : i32
    return %c0_i32, %c0_i32_0 : i32, i32
  }
  func.func @transform_6(%arg0: i32, %arg1: i32) -> (i32, i32) {
    %c0_i32 = arith.constant 0 : i32
    %c0_i32_0 = arith.constant 0 : i32
    return %arg0, %c0_i32 : i32, i32
  }
}

module attributes {stable_mosaic.version = 11 : i64} {
  func.func @_gemm_kernel(%arg0: i32, %arg1: i32, %arg2: i32, %arg3: memref<16x32xbf16, #tpu.memory_space<vmem>>, %arg4: memref<32x64xbf16, #tpu.memory_space<vmem>>, %arg5: memref<1x64xf32, #tpu.memory_space<vmem>>, %arg6: memref<16x64xbf16, #tpu.memory_space<vmem>>, %arg7: memref<16x64xf32, #tpu.memory_space<vmem>>) attributes {dimension_semantics = [#tpu.dimension_semantics<parallel>, #tpu.dimension_semantics<parallel>, #tpu.dimension_semantics<arbitrary>], iteration_bounds = array<i64: 1, 1, 1>, scalar_prefetch = 0 : i64, scratch_operands = 1 : i64, tpu.core_type = #tpu.core_type<tc>, window_params = [{transform_indices = @transform_0, window_bounds = array<i64: 16, 32>}, {transform_indices = @transform_1, window_bounds = array<i64: 32, 64>}, {transform_indices = @transform_2, window_bounds = array<i64: 1, 64>}, {transform_indices = @transform_3, window_bounds = array<i64: 16, 64>}]} {
    %c0_i32 = arith.constant 0 : i32
    %0 = arith.cmpi eq, %arg2, %c0_i32 : i32
    %1 = arith.extui %0 : i1 to i32
    %c0_i32_0 = arith.constant 0 : i32
    %2 = arith.cmpi ne, %1, %c0_i32_0 : i32
    scf.if %2 {
      %cst_10 = arith.constant 0.000000e+00 : f32
      %12 = vector.broadcast %cst_10 : f32 to vector<16x64xf32>
      %c0_11 = arith.constant 0 : index
      %c0_12 = arith.constant 0 : index
      %13 = vector.load %arg7[%c0_11, %c0_12] : memref<16x64xf32, #tpu.memory_space<vmem>>, vector<16x64xf32>
      tpu.vector_store %arg7[%c0_11, %c0_12], %12 {strides = array<i32>} : memref<16x64xf32, #tpu.memory_space<vmem>>, vector<16x64xf32>,
    } else {
    }
    %c0 = arith.constant 0 : index
    %c0_1 = arith.constant 0 : index
    %3 = vector.load %arg7[%c0, %c0_1] : memref<16x64xf32, #tpu.memory_space<vmem>>, vector<16x64xf32>
    %c0_2 = arith.constant 0 : index
    %c0_3 = arith.constant 0 : index
    %4 = vector.load %arg3[%c0_2, %c0_3] : memref<16x32xbf16, #tpu.memory_space<vmem>>, vector<16x32xbf16>
    %c0_4 = arith.constant 0 : index
    %c0_5 = arith.constant 0 : index
    %5 = vector.load %arg4[%c0_4, %c0_5] : memref<32x64xbf16, #tpu.memory_space<vmem>>, vector<32x64xbf16>
    %cst = arith.constant dense<0.000000e+00> : vector<16x64xf32>
    %6 = tpu.matmul %4, %5, %cst {dimension_numbers = #tpu.dot_dimension_numbers<[1], [0], [0], [1], [0, 0, 1, 1], [], []>} : vector<16x32xbf16>, vector<32x64xbf16>, vector<16x64xf32> -> vector<16x64xf32>
    %7 = arith.addf %3, %6 : vector<16x64xf32>
    %c0_6 = arith.constant 0 : index
    %c0_7 = arith.constant 0 : index
    %8 = vector.load %arg7[%c0_6, %c0_7] : memref<16x64xf32, #tpu.memory_space<vmem>>, vector<16x64xf32>
    tpu.vector_store %arg7[%c0_6, %c0_7], %7 {strides = array<i32>} : memref<16x64xf32, #tpu.memory_space<vmem>>, vector<16x64xf32>,
    %c0_i32_8 = arith.constant 0 : i32
    %9 = arith.cmpi eq, %arg2, %c0_i32_8 : i32
    %10 = arith.extui %9 : i1 to i32
    %c0_i32_9 = arith.constant 0 : i32
    %11 = arith.cmpi ne, %10, %c0_i32_9 : i32
    scf.if %11 {
      %c0_10 = arith.constant 0 : index
      %c0_11 = arith.constant 0 : index
      %12 = vector.load %arg7[%c0_10, %c0_11] : memref<16x64xf32, #tpu.memory_space<vmem>>, vector<16x64xf32>
      %c0_12 = arith.constant 0 : index
      %c0_13 = arith.constant 0 : index
      %13 = vector.load %arg5[%c0_12, %c0_13] : memref<1x64xf32, #tpu.memory_space<vmem>>, vector<1x64xf32>
      %14 = vector.broadcast %13 : vector<1x64xf32> to vector<16x64xf32>
      %15 = arith.addf %12, %14 : vector<16x64xf32>
      %cst_14 = arith.constant 5.000000e-01 : f32
      %16 = vector.broadcast %cst_14 : f32 to vector<16x64xf32>
      %17 = arith.mulf %16, %15 : vector<16x64xf32>
      %cst_15 = arith.constant 4.471500e-02 : f32
      %18 = vector.broadcast %cst_15 : f32 to vector<16x64xf32>
      %19 = arith.mulf %18, %15 : vector<16x64xf32>
      %20 = arith.mulf %19, %15 : vector<16x64xf32>
      %21 = arith.mulf %20, %15 : vector<16x64xf32>
      %22 = arith.addf %15, %21 : vector<16x64xf32>
      %cst_16 = arith.constant 0.797884583 : f32
      %23 = vector.broadcast %cst_16 : f32 to vector<16x64xf32>
      %24 = arith.mulf %23, %22 : vector<16x64xf32>
      %25 = math.tanh %24 : vector<16x64xf32>
      %cst_17 = arith.constant 1.000000e+00 : f32
      %26 = vector.broadcast %cst_17 : f32 to vector<16x64xf32>
      %27 = arith.addf %26, %25 : vector<16x64xf32>
      %28 = arith.mulf %17, %27 : vector<16x64xf32>
      %29 = arith.truncf %28 : vector<16x64xf32> to vector<16x64xbf16>
      %c0_18 = arith.constant 0 : index
      %c0_19 = arith.constant 0 : index
      %30 = vector.load %arg6[%c0_18, %c0_19] : memref<16x64xbf16, #tpu.memory_space<vmem>>, vector<16x64xbf16>
      tpu.vector_store %arg6[%c0_18, %c0_19], %29 {strides = array<i32>} : memref<16x64xbf16, #tpu.memory_space<vmem>>, vector<16x64xbf16>,
    } else {
    }
    return
  }
  func.func @transform_0(%arg0: i32, %arg1: i32, %arg2: i32) -> (i32, i32) {
    %c0_i32 = arith.constant 0 : i32
    return %arg0, %arg2 : i32, i32
  }
  func.func @transform_1(%arg0: i32, %arg1: i32, %arg2: i32) -> (i32, i32) {
    %c0_i32 = arith.constant 0 : i32
    return %arg2, %arg1 : i32, i32
  }
  func.func @transform_2(%arg0: i32, %arg1: i32, %arg2: i32) -> (i32, i32) {
    %c0_i32 = arith.constant 0 : i32
    %c0_i32_0 = arith.constant 0 : i32
    return %c0_i32, %arg1 : i32, i32
  }
  func.func @transform_3(%arg0: i32, %arg1: i32, %arg2: i32) -> (i32, i32) {
    %c0_i32 = arith.constant 0 : i32
    return %arg0, %arg1 : i32, i32
  }
}

module attributes {stable_mosaic.version = 11 : i64} {
  func.func @_gemm_res_ln_kernel(%arg0: i32, %arg1: i32, %arg2: memref<16x64xbf16, #tpu.memory_space<vmem>>, %arg3: memref<64x32xbf16, #tpu.memory_space<vmem>>, %arg4: memref<1x32xf32, #tpu.memory_space<vmem>>, %arg5: memref<16x32xbf16, #tpu.memory_space<vmem>>, %arg6: memref<1x32xf32, #tpu.memory_space<vmem>>, %arg7: memref<1x32xf32, #tpu.memory_space<vmem>>, %arg8: memref<16x32xbf16, #tpu.memory_space<vmem>>, %arg9: memref<16x32xf32, #tpu.memory_space<vmem>>) attributes {dimension_semantics = [#tpu.dimension_semantics<parallel>, #tpu.dimension_semantics<arbitrary>], iteration_bounds = array<i64: 1, 1>, scalar_prefetch = 0 : i64, scratch_operands = 1 : i64, tpu.core_type = #tpu.core_type<tc>, window_params = [{transform_indices = @transform_0, window_bounds = array<i64: 16, 64>}, {transform_indices = @transform_1, window_bounds = array<i64: 64, 32>}, {pipeline_mode = #tpu.pipeline_mode<synchronous>, transform_indices = @transform_2, window_bounds = array<i64: 1, 32>}, {transform_indices = @transform_3, window_bounds = array<i64: 16, 32>}, {pipeline_mode = #tpu.pipeline_mode<synchronous>, transform_indices = @transform_4, window_bounds = array<i64: 1, 32>}, {pipeline_mode = #tpu.pipeline_mode<synchronous>, transform_indices = @transform_5, window_bounds = array<i64: 1, 32>}, {transform_indices = @transform_6, window_bounds = array<i64: 16, 32>}]} {
    %c0_i32 = arith.constant 0 : i32
    %0 = arith.cmpi eq, %arg1, %c0_i32 : i32
    %1 = arith.extui %0 : i1 to i32
    %c0_i32_0 = arith.constant 0 : i32
    %2 = arith.cmpi ne, %1, %c0_i32_0 : i32
    scf.if %2 {
      %cst_10 = arith.constant 0.000000e+00 : f32
      %12 = vector.broadcast %cst_10 : f32 to vector<16x32xf32>
      %c0_11 = arith.constant 0 : index
      %c0_12 = arith.constant 0 : index
      %13 = vector.load %arg9[%c0_11, %c0_12] : memref<16x32xf32, #tpu.memory_space<vmem>>, vector<16x32xf32>
      tpu.vector_store %arg9[%c0_11, %c0_12], %12 {strides = array<i32>} : memref<16x32xf32, #tpu.memory_space<vmem>>, vector<16x32xf32>,
    } else {
    }
    %c0 = arith.constant 0 : index
    %c0_1 = arith.constant 0 : index
    %3 = vector.load %arg9[%c0, %c0_1] : memref<16x32xf32, #tpu.memory_space<vmem>>, vector<16x32xf32>
    %c0_2 = arith.constant 0 : index
    %c0_3 = arith.constant 0 : index
    %4 = vector.load %arg2[%c0_2, %c0_3] : memref<16x64xbf16, #tpu.memory_space<vmem>>, vector<16x64xbf16>
    %c0_4 = arith.constant 0 : index
    %c0_5 = arith.constant 0 : index
    %5 = vector.load %arg3[%c0_4, %c0_5] : memref<64x32xbf16, #tpu.memory_space<vmem>>, vector<64x32xbf16>
    %cst = arith.constant dense<0.000000e+00> : vector<16x32xf32>
    %6 = tpu.matmul %4, %5, %cst {dimension_numbers = #tpu.dot_dimension_numbers<[1], [0], [0], [1], [0, 0, 1, 1], [], []>} : vector<16x64xbf16>, vector<64x32xbf16>, vector<16x32xf32> -> vector<16x32xf32>
    %7 = arith.addf %3, %6 : vector<16x32xf32>
    %c0_6 = arith.constant 0 : index
    %c0_7 = arith.constant 0 : index
    %8 = vector.load %arg9[%c0_6, %c0_7] : memref<16x32xf32, #tpu.memory_space<vmem>>, vector<16x32xf32>
    tpu.vector_store %arg9[%c0_6, %c0_7], %7 {strides = array<i32>} : memref<16x32xf32, #tpu.memory_space<vmem>>, vector<16x32xf32>,
    %c0_i32_8 = arith.constant 0 : i32
    %9 = arith.cmpi eq, %arg1, %c0_i32_8 : i32
    %10 = arith.extui %9 : i1 to i32
    %c0_i32_9 = arith.constant 0 : i32
    %11 = arith.cmpi ne, %10, %c0_i32_9 : i32
    scf.if %11 {
      %c0_10 = arith.constant 0 : index
      %c0_11 = arith.constant 0 : index
      %12 = vector.load %arg9[%c0_10, %c0_11] : memref<16x32xf32, #tpu.memory_space<vmem>>, vector<16x32xf32>
      %c0_12 = arith.constant 0 : index
      %c0_13 = arith.constant 0 : index
      %13 = vector.load %arg4[%c0_12, %c0_13] : memref<1x32xf32, #tpu.memory_space<vmem>>, vector<1x32xf32>
      %14 = vector.broadcast %13 : vector<1x32xf32> to vector<16x32xf32>
      %15 = arith.addf %12, %14 : vector<16x32xf32>
      %c0_14 = arith.constant 0 : index
      %c0_15 = arith.constant 0 : index
      %16 = vector.load %arg5[%c0_14, %c0_15] : memref<16x32xbf16, #tpu.memory_space<vmem>>, vector<16x32xbf16>
      %17 = arith.extf %16 : vector<16x32xbf16> to vector<16x32xf32>
      %18 = arith.addf %15, %17 : vector<16x32xf32>
      %cst_16 = arith.constant dense<0.000000e+00> : vector<16xf32>
      %19 = vector.multi_reduction <add>, %18, %cst_16 [1] : vector<16x32xf32> to vector<16xf32>
      %20 = vector.shape_cast %19 : vector<16xf32> to vector<16x1xf32>
      %cst_17 = arith.constant 3.200000e+01 : f32
      %21 = vector.broadcast %cst_17 : f32 to vector<16x1xf32>
      %22 = arith.divf %20, %21 : vector<16x1xf32>
      %23 = vector.broadcast %22 : vector<16x1xf32> to vector<16x32xf32>
      %24 = arith.subf %18, %23 : vector<16x32xf32>
      %25 = vector.broadcast %22 : vector<16x1xf32> to vector<16x32xf32>
      %26 = arith.subf %18, %25 : vector<16x32xf32>
      %27 = arith.mulf %24, %26 : vector<16x32xf32>
      %cst_18 = arith.constant dense<0.000000e+00> : vector<16xf32>
      %28 = vector.multi_reduction <add>, %27, %cst_18 [1] : vector<16x32xf32> to vector<16xf32>
      %29 = vector.shape_cast %28 : vector<16xf32> to vector<16x1xf32>
      %cst_19 = arith.constant 3.200000e+01 : f32
      %30 = vector.broadcast %cst_19 : f32 to vector<16x1xf32>
      %31 = arith.divf %29, %30 : vector<16x1xf32>
      %32 = vector.broadcast %22 : vector<16x1xf32> to vector<16x32xf32>
      %33 = arith.subf %18, %32 : vector<16x32xf32>
      %cst_20 = arith.constant 9.99999996E-13 : f32
      %34 = vector.broadcast %cst_20 : f32 to vector<16x1xf32>
      %35 = arith.addf %31, %34 : vector<16x1xf32>
      %36 = math.rsqrt %35 : vector<16x1xf32>
      %37 = vector.broadcast %36 : vector<16x1xf32> to vector<16x32xf32>
      %38 = arith.mulf %33, %37 : vector<16x32xf32>
      %c0_21 = arith.constant 0 : index
      %c0_22 = arith.constant 0 : index
      %39 = vector.load %arg6[%c0_21, %c0_22] : memref<1x32xf32, #tpu.memory_space<vmem>>, vector<1x32xf32>
      %40 = vector.broadcast %39 : vector<1x32xf32> to vector<16x32xf32>
      %41 = arith.mulf %38, %40 : vector<16x32xf32>
      %c0_23 = arith.constant 0 : index
      %c0_24 = arith.constant 0 : index
      %42 = vector.load %arg7[%c0_23, %c0_24] : memref<1x32xf32, #tpu.memory_space<vmem>>, vector<1x32xf32>
      %43 = vector.broadcast %42 : vector<1x32xf32> to vector<16x32xf32>
      %44 = arith.addf %41, %43 : vector<16x32xf32>
      %45 = arith.truncf %44 : vector<16x32xf32> to vector<16x32xbf16>
      %c0_25 = arith.constant 0 : index
      %c0_26 = arith.constant 0 : index
      %46 = vector.load %arg8[%c0_25, %c0_26] : memref<16x32xbf16, #tpu.memory_space<vmem>>, vector<16x32xbf16>
      tpu.vector_store %arg8[%c0_25, %c0_26], %45 {strides = array<i32>} : memref<16x32xbf16, #tpu.memory_space<vmem>>, vector<16x32xbf16>,
    } else {
    }
    return
  }
  func.func @transform_0(%arg0: i32, %arg1: i32) -> (i32, i32) {
    %c0_i32 = arith.constant 0 : i32
    return %arg0, %arg1 : i32, i32
  }
  func.func @transform_1(%arg0: i32, %arg1: i32) -> (i32, i32) {
    %c0_i32 = arith.constant 0 : i32
    %c0_i32_0 = arith.constant 0 : i32
    return %arg1, %c0_i32 : i32, i32
  }
  func.func @transform_2(%arg0: i32, %arg1: i32) -> (i32, i32) {
    %c0_i32 = arith.constant 0 : i32
    %c0_i32_0 = arith.constant 0 : i32
    %c0_i32_1 = arith.constant 0 : i32
    return %c0_i32, %c0_i32_0 : i32, i32
  }
  func.func @transform_3(%arg0: i32, %arg1: i32) -> (i32, i32) {
    %c0_i32 = arith.constant 0 : i32
    %c0_i32_0 = arith.constant 0 : i32
    return %arg0, %c0_i32 : i32, i32
  }
  func.func @transform_4(%arg0: i32, %arg1: i32) -> (i32, i32) {
    %c0_i32 = arith.constant 0 : i32
    %c0_i32_0 = arith.constant 0 : i32
    %c0_i32_1 = arith.constant 0 : i32
    return %c0_i32, %c0_i32_0 : i32, i32
  }
  func.func @transform_5(%arg0: i32, %arg1: i32) -> (i32, i32) {
    %c0_i32 = arith.constant 0 : i32
    %c0_i32_0 = arith.constant 0 : i32
    %c0_i32_1 = arith.constant 0 : i32
    return %c0_i32, %c0_i32_0 : i32, i32
  }
  func.func @transform_6(%arg0: i32, %arg1: i32) -> (i32, i32) {
    %c0_i32 = arith.constant 0 : i32
    %c0_i32_0 = arith.constant 0 : i32
    return %arg0, %c0_i32 : i32, i32
  }
}

module attributes {stable_mosaic.version = 11 : i64} {
  func.func @_gemm_kernel(%arg0: i32, %arg1: i32, %arg2: i32, %arg3: memref<16x32xbf16, #tpu.memory_space<vmem>>, %arg4: memref<32x128xbf16, #tpu.memory_space<vmem>>, %arg5: memref<1x128xf32, #tpu.memory_space<vmem>>, %arg6: memref<16x128xf32, #tpu.memory_space<vmem>>, %arg7: memref<16x128xf32, #tpu.memory_space<vmem>>) attributes {dimension_semantics = [#tpu.dimension_semantics<parallel>, #tpu.dimension_semantics<parallel>, #tpu.dimension_semantics<arbitrary>], iteration_bounds = array<i64: 1, 1, 1>, scalar_prefetch = 0 : i64, scratch_operands = 1 : i64, tpu.core_type = #tpu.core_type<tc>, window_params = [{transform_indices = @transform_0, window_bounds = array<i64: 16, 32>}, {transform_indices = @transform_1, window_bounds = array<i64: 32, 128>}, {transform_indices = @transform_2, window_bounds = array<i64: 1, 128>}, {transform_indices = @transform_3, window_bounds = array<i64: 16, 128>}]} {
    %c0_i32 = arith.constant 0 : i32
    %0 = arith.cmpi eq, %arg2, %c0_i32 : i32
    %1 = arith.extui %0 : i1 to i32
    %c0_i32_0 = arith.constant 0 : i32
    %2 = arith.cmpi ne, %1, %c0_i32_0 : i32
    scf.if %2 {
      %cst_10 = arith.constant 0.000000e+00 : f32
      %12 = vector.broadcast %cst_10 : f32 to vector<16x128xf32>
      %c0_11 = arith.constant 0 : index
      %c0_12 = arith.constant 0 : index
      %13 = vector.load %arg7[%c0_11, %c0_12] : memref<16x128xf32, #tpu.memory_space<vmem>>, vector<16x128xf32>
      tpu.vector_store %arg7[%c0_11, %c0_12], %12 {strides = array<i32>} : memref<16x128xf32, #tpu.memory_space<vmem>>, vector<16x128xf32>,
    } else {
    }
    %c0 = arith.constant 0 : index
    %c0_1 = arith.constant 0 : index
    %3 = vector.load %arg7[%c0, %c0_1] : memref<16x128xf32, #tpu.memory_space<vmem>>, vector<16x128xf32>
    %c0_2 = arith.constant 0 : index
    %c0_3 = arith.constant 0 : index
    %4 = vector.load %arg3[%c0_2, %c0_3] : memref<16x32xbf16, #tpu.memory_space<vmem>>, vector<16x32xbf16>
    %c0_4 = arith.constant 0 : index
    %c0_5 = arith.constant 0 : index
    %5 = vector.load %arg4[%c0_4, %c0_5] : memref<32x128xbf16, #tpu.memory_space<vmem>>, vector<32x128xbf16>
    %cst = arith.constant dense<0.000000e+00> : vector<16x128xf32>
    %6 = tpu.matmul %4, %5, %cst {dimension_numbers = #tpu.dot_dimension_numbers<[1], [0], [0], [1], [0, 0, 1, 1], [], []>} : vector<16x32xbf16>, vector<32x128xbf16>, vector<16x128xf32> -> vector<16x128xf32>
    %7 = arith.addf %3, %6 : vector<16x128xf32>
    %c0_6 = arith.constant 0 : index
    %c0_7 = arith.constant 0 : index
    %8 = vector.load %arg7[%c0_6, %c0_7] : memref<16x128xf32, #tpu.memory_space<vmem>>, vector<16x128xf32>
    tpu.vector_store %arg7[%c0_6, %c0_7], %7 {strides = array<i32>} : memref<16x128xf32, #tpu.memory_space<vmem>>, vector<16x128xf32>,
    %c0_i32_8 = arith.constant 0 : i32
    %9 = arith.cmpi eq, %arg2, %c0_i32_8 : i32
    %10 = arith.extui %9 : i1 to i32
    %c0_i32_9 = arith.constant 0 : i32
    %11 = arith.cmpi ne, %10, %c0_i32_9 : i32
    scf.if %11 {
      %c0_10 = arith.constant 0 : index
      %c0_11 = arith.constant 0 : index
      %12 = vector.load %arg7[%c0_10, %c0_11] : memref<16x128xf32, #tpu.memory_space<vmem>>, vector<16x128xf32>
      %c0_12 = arith.constant 0 : index
      %c0_13 = arith.constant 0 : index
      %13 = vector.load %arg5[%c0_12, %c0_13] : memref<1x128xf32, #tpu.memory_space<vmem>>, vector<1x128xf32>
      %14 = vector.broadcast %13 : vector<1x128xf32> to vector<16x128xf32>
      %15 = arith.addf %12, %14 : vector<16x128xf32>
      %c0_14 = arith.constant 0 : index
      %c0_15 = arith.constant 0 : index
      %16 = vector.load %arg6[%c0_14, %c0_15] : memref<16x128xf32, #tpu.memory_space<vmem>>, vector<16x128xf32>
      tpu.vector_store %arg6[%c0_14, %c0_15], %15 {strides = array<i32>} : memref<16x128xf32, #tpu.memory_space<vmem>>, vector<16x128xf32>,
    } else {
    }
    return
  }
  func.func @transform_0(%arg0: i32, %arg1: i32, %arg2: i32) -> (i32, i32) {
    %c0_i32 = arith.constant 0 : i32
    return %arg0, %arg2 : i32, i32
  }
  func.func @transform_1(%arg0: i32, %arg1: i32, %arg2: i32) -> (i32, i32) {
    %c0_i32 = arith.constant 0 : i32
    return %arg2, %arg1 : i32, i32
  }
  func.func @transform_2(%arg0: i32, %arg1: i32, %arg2: i32) -> (i32, i32) {
    %c0_i32 = arith.constant 0 : i32
    %c0_i32_0 = arith.constant 0 : i32
    return %c0_i32, %arg1 : i32, i32
  }
  func.func @transform_3(%arg0: i32, %arg1: i32, %arg2: i32) -> (i32, i32) {
    %c0_i32 = arith.constant 0 : i32
    return %arg0, %arg1 : i32, i32
  }
}

</mosaic_0001>

<llo_original>
// kernel: torch_model_forward.12
$region0: #{torch_model_forward.12}
  #allocation0 [shape = 'u32[]', space=smem, size = 0x4, offset = 0x4, fixed_abs, tag = 'smem constant byte address 0x4 - core index']
  #allocation1 [shape = 'u32[72,128]{1,0:T(1,128)}', space=vmem, size = 0x9000, scoped, tag = 'internal scratch']
  %s0 = inlined_call_operand.vmem [shape: bf16[16,32], index: 0, kind: input, shape index: {}]
  %s1 = inlined_call_operand.vmem [shape: f32[1,32], index: 1, kind: input, shape index: {}]
  %s2 = inlined_call_operand.vmem [shape: f32[1,32], index: 2, kind: input, shape index: {}]
  %s3 = inlined_call_operand.vmem [shape: bf16[16,32], index: 3, kind: output, shape index: {}]
  %s4 = sld [smem:[#allocation0]]
  $region22: #{torch_model_forward.12} parent=0
    _
  %s6 = ssub.s32 1, %s4
  %s7 = scalar_select 0, %s6, %s4
  // Predicated region
  $region2: #{torch_model_forward.12} parent=0 // pred_check
    _
  $region3: #{torch_model_forward.12} parent=0 // pred_check_branch
    %9 = sbr.rel (0) target = $region5
  $region4: #{torch_model_forward.12} parent=0 // pred_region
    _
  $region5: #{torch_model_forward.12} parent=0 // pred_fallthru
    _
  // Predicated region
  $region6: #{torch_model_forward.12} parent=0 // pred_check
    _
  $region7: #{torch_model_forward.12} parent=0 // pred_check_branch
    %11 = sbr.rel (0) target = $region9
  $region8: #{torch_model_forward.12} parent=0 // pred_region
    _
  $region9: #{torch_model_forward.12} parent=0 // pred_fallthru
    _
  // Predicated region
  $region10: #{torch_model_forward.12} parent=0 // pred_check
    _
  $region11: #{torch_model_forward.12} parent=0 // pred_check_branch
    %13 = sbr.rel (0) target = $region13
  $region12: #{torch_model_forward.12} parent=0 // pred_region
    _
  $region13: #{torch_model_forward.12} parent=0 // pred_fallthru
    _
  %v14 = vld [vmem:[%s0] sm:$0xf]
  %v15 = vld [vmem:[%s0 + $0x4] sm:$0xf]
  %v16 = vunpack.c.l.bf16 %v14
  %v17 = vunpack.c.l.bf16 %v15
  %vm18 = vcmask 261120
  %v19 = vsel %vm18, %v16, 0.0
  %20 = vadd.xlane.f32.xlu0 %v19
  %v21 = vpop.xlane.xlu0 %20
  %v22 = vsel %vm18, %v17, 0.0
  %23 = vadd.xlane.f32.xlu0 %v22
  %v24 = vpop.xlane.xlu0 %23
  %v25 = vrcp.pop 32.0
  %v26 = vmul.f32 32.0, %v25
  %v27 = vsub.f32 1.0, %v26
  %v28 = vmul.f32 %v25, %v27
  %v29 = vadd.f32 %v25, %v28
  %vm30 = vweird.f32 %v25
  %v31 = vsel %vm30, %v25, %v29
  %v32 = vmul.f32 %v21, %v31
  %v33 = vmul.f32 %v24, %v31
  %v34 = vsub.f32 %v16, %v32
  %v35 = vsub.f32 %v17, %v33
  %v36 = vmul.f32 %v34, %v34
  %v37 = vmul.f32 %v35, %v35
  %v38 = vsel %vm18, %v36, 0.0
  %39 = vadd.xlane.f32.xlu0 %v38
  %v40 = vpop.xlane.xlu0 %39
  %v41 = vsel %vm18, %v37, 0.0
  %42 = vadd.xlane.f32.xlu0 %v41
  %v43 = vpop.xlane.xlu0 %42
  %v44 = vmul.f32 %v40, %v31
  %v45 = vmul.f32 %v43, %v31
  %v46 = vadd.f32 %v44, 1e-12
  %v47 = vadd.f32 %v45, 1e-12
  %v48 = vrsqrt.pop %v46
  %v49 = vmul.f32 %v48, %v46
  %v50 = vmul.f32 %v49, %v48
  %v51 = vmul.f32 0.5, %v50
  %v52 = vsub.f32 1.5, %v51
  %v53 = vmul.f32 %v48, %v52
  %vm54 = vweird.f32 %v46
  %vm55 = vweird.f32 %v48
  %vm56 = vmor %vm54, %vm55
  %v57 = vsel %vm56, %v48, %v53
  %v58 = vrsqrt.pop %v47
  %v59 = vmul.f32 %v58, %v47
  %v60 = vmul.f32 %v59, %v58
  %v61 = vmul.f32 0.5, %v60
  %v62 = vsub.f32 1.5, %v61
  %v63 = vmul.f32 %v58, %v62
  %vm64 = vweird.f32 %v47
  %vm65 = vweird.f32 %v58
  %vm66 = vmor %vm64, %vm65
  %v67 = vsel %vm66, %v58, %v63
  %v68 = vmul.f32 %v34, %v57
  %v69 = vmul.f32 %v35, %v67
  %v70 = vld [vmem:[%s1] sm:$0x1]
  %v72 = vperm.slane %v70, 0
  %v74 = vmul.f32 %v68, %v72
  %v75 = vmul.f32 %v69, %v72
  %v76 = vld [vmem:[%s2] sm:$0x1]
  %v78 = vperm.slane %v76, 0
  %v80 = vadd.f32 %v74, %v78
  %v81 = vadd.f32 %v75, %v78
  %v82 = vpack.c.bf16 %v80, %v80
  %v83 = vpack.c.bf16 %v81, %v81
  %vm84 = vcmask 257024
  %85 = vst.msk [vmem:[%s3] sm:$0xf] %vm84, %v82
  %86 = vst.msk [vmem:[%s3 + $0x4] sm:$0xf] %vm84, %v83
  // Predicated region
  $region14: #{torch_model_forward.12} parent=0 // pred_check
    _
  $region15: #{torch_model_forward.12} parent=0 // pred_check_branch
    %88 = sbr.rel (0) target = $region17
  $region16: #{torch_model_forward.12} parent=0 // pred_region
    _
  $region17: #{torch_model_forward.12} parent=0 // pred_fallthru
    _
  // Predicated region
  $region18: #{torch_model_forward.12} parent=0 // pred_check
    _
  $region19: #{torch_model_forward.12} parent=0 // pred_check_branch
    %90 = sbr.rel (0) target = $region21
  $region20: #{torch_model_forward.12} parent=0 // pred_region
    _
  $region21: #{torch_model_forward.12} parent=0 // pred_fallthru
    _

// kernel: torch_model_forward.13
$region0: #{torch_model_forward.13}
  #allocation0 [shape = 'u32[]', space=smem, size = 0x4, offset = 0x4, fixed_abs, tag = 'smem constant byte address 0x4 - core index']
  #allocation1 [shape = 'u32[72,128]{1,0:T(1,128)}', space=vmem, size = 0x9000, scoped, tag = 'internal scratch']
  #allocation2 [shape = 'f32[8,48]{1,0:T(8,128)}', space=vmem, size = 0x1000, scoped, tag = 'scratch operand']
  %s0 = inlined_call_operand.vmem [shape: bf16[2,8,32], index: 0, kind: input, shape index: {}]
  %s1 = inlined_call_operand.vmem [shape: bf16[2,32,48], index: 1, kind: input, shape index: {}]
  %s2 = inlined_call_operand.vmem [shape: f32[2,3,16], index: 2, kind: input, shape index: {}]
  %s3 = inlined_call_operand.vmem [shape: bf16[2,2,8,16], index: 3, kind: output, shape index: {0}]
  %s4 = inlined_call_operand.vmem [shape: bf16[2,2,8,16], index: 4, kind: output, shape index: {1}]
  %s5 = inlined_call_operand.vmem [shape: bf16[2,2,8,16], index: 5, kind: output, shape index: {2}]
  %6 = xla_tuple %s3, %s4, %s5
  %s7 = sld [smem:[#allocation0]]
  $region69: #{torch_model_forward.13} parent=0
    _
  %s9 = ssub.s32 1, %s7
  %s10 = scalar_select 0, %s9, %s7
  loop: start=0, step=1, limit=6
  $region2: #{torch_model_forward.13} parent=0 // loop_pre_header
    _
  $region3: #{torch_model_forward.13} parent=0 // loop_header
    %s12 = sphi 0, %s16
    %p13 = scmp.ge.s32.totalorder %s12, 6
    %s19 = sphi 0, %s45
    %s20 = sphi 0, %s41
    %s21 = sphi 0, %s37
    %s22 = sphi 0, %s33
    %s23 = sphi 0, %s19
    %s24 = sphi 0, %s20
    %s25 = sphi 0, %s21
    %s26 = sphi 0, %s22
    %s27 = sphi 0, %s23
    %s28 = sphi 0, %s24
    %s29 = sphi 0, %s25
    %s30 = sphi 0, %s26
    %s52 = sphi 0, %s54
    %s55 = sphi 0, %s52
    %s56 = sphi 0, %s55
    %s72 = sphi 0, %s56
    %s80 = sphi 0, %s82
    %s83 = sphi 0, %s80
    %s84 = sphi 0, %s83
    %s100 = sphi 0, %s84
    %s106 = sphi 0, %s108
    %s109 = sphi 0, %s106
    %s110 = sphi 0, %s109
    %s126 = sphi 0, %s110
    %s136 = sphi 0, %s138
    %s139 = sphi 0, %s136
    %s140 = sphi 0, %s139
    %s156 = sphi 0, %s140
    %s166 = sphi 0, %s168
    %s169 = sphi 0, %s166
    %s170 = sphi 0, %s169
    %s186 = sphi 0, %s170
    %s196 = sphi 0, %s198
    %s199 = sphi 0, %s196
    %s200 = sphi 0, %s199
    %s216 = sphi 0, %s200
  $region4: #{torch_model_forward.13} parent=0 // loop_header_branch
    %15 = sbr.rel (%p13) target = $region8
  $region5: #{torch_model_forward.13} parent=0 // loop_body
    %s17 = ssub.s32 %s12, 1
    %s18 = ssub.s32 %s12, 2
    %s31 = sadd.s32 1, %s22
    %p32 = scmp.ge.s32.totalorder %s31, 1
    %s33 = scalar_select %p32, 0, %s31
    %s34 = sadd.s32 1, %s21
    %s35 = scalar_select %p32, %s34, %s21
    %p36 = scmp.ge.s32.totalorder %s35, 2
    %s37 = scalar_select %p36, 0, %s35
    %s38 = sadd.s32 1, %s20
    %s39 = scalar_select %p36, %s38, %s20
    %p40 = scmp.ge.s32.totalorder %s39, 1
    %s41 = scalar_select %p40, 0, %s39
    %s42 = sadd.s32 1, %s19
    %s43 = scalar_select %p40, %s42, %s19
    %p44 = scmp.ge.s32.totalorder %s43, 2
    %s45 = scalar_select %p44, 0, %s43
    %s46 = ssub.s32 %s19, %s45
    %s47 = ssub.s32 %s20, %s41
    %s48 = sor.u32 %s46, %s47
    %s49 = ssub.s32 %s22, %s33
    %s50 = sor.u32 %s48, %s49
    %p51 = scmp.eq.s32.totalorder %s50, 0
    %s53 = sadd.s32 %s52, 1
    %s54 = scalar_select %p51, %s52, %s53
    %p57 = pneg %p51
    %p58 = scmp.eq.s32.totalorder %s12, 3
    %p59 = por %p57, %p58
    %p60 = scmp.ne.s32.totalorder %s52, %s55
    %p61 = scmp.eq.s32.totalorder %s12, 0
    %p62 = por %p60, %p61
    %p63 = scmp.ne.s32.totalorder %s52, %s55
    %p64 = scmp.eq.s32.totalorder %s17, 3
    %p65 = por %p63, %p64
    %p66 = scmp.ne.s32.totalorder %s55, %s56
    %p67 = scmp.eq.s32.totalorder %s17, 0
    %p68 = por %p66, %p67
    %p69 = scmp.ne.s32.totalorder %s55, %s56
    %p70 = scmp.eq.s32.totalorder %s18, 3
    %p71 = por %p69, %p70
    %p73 = scmp.ne.s32.totalorder %s56, %s72
    %p74 = scmp.eq.s32.totalorder %s18, 0
    %p75 = por %p73, %p74
    %s76 = ssub.s32 %s21, %s37
    %s77 = ssub.s32 %s22, %s33
    %s78 = sor.u32 %s76, %s77
    %p79 = scmp.eq.s32.totalorder %s78, 0
    %s81 = sadd.s32 %s80, 1
    %s82 = scalar_select %p79, %s80, %s81
    %p85 = pneg %p79
    %p86 = scmp.eq.s32.totalorder %s12, 3
    %p87 = por %p85, %p86
    %p88 = scmp.ne.s32.totalorder %s80, %s83
    %p89 = scmp.eq.s32.totalorder %s12, 0
    %p90 = por %p88, %p89
    %p91 = scmp.ne.s32.totalorder %s80, %s83
    %p92 = scmp.eq.s32.totalorder %s17, 3
    %p93 = por %p91, %p92
    %p94 = scmp.ne.s32.totalorder %s83, %s84
    %p95 = scmp.eq.s32.totalorder %s17, 0
    %p96 = por %p94, %p95
    %p97 = scmp.ne.s32.totalorder %s83, %s84
    %p98 = scmp.eq.s32.totalorder %s18, 3
    %p99 = por %p97, %p98
    %p101 = scmp.ne.s32.totalorder %s84, %s100
    %p102 = scmp.eq.s32.totalorder %s18, 0
    %p103 = por %p101, %p102
    %s104 = ssub.s32 %s21, %s37
    %p105 = scmp.eq.s32.totalorder %s104, 0
    %s107 = sadd.s32 %s106, 1
    %s108 = scalar_select %p105, %s106, %s107
    %p111 = pneg %p105
    %p112 = scmp.eq.s32.totalorder %s12, 3
    %p113 = por %p111, %p112
    %p114 = scmp.ne.s32.totalorder %s106, %s109
    %p115 = scmp.eq.s32.totalorder %s12, 0
    %p116 = por %p114, %p115
    %p117 = scmp.ne.s32.totalorder %s106, %s109
    %p118 = scmp.eq.s32.totalorder %s17, 3
    %p119 = por %p117, %p118
    %p120 = scmp.ne.s32.totalorder %s109, %s110
    %p121 = scmp.eq.s32.totalorder %s17, 0
    %p122 = por %p120, %p121
    %p123 = scmp.ne.s32.totalorder %s109, %s110
    %p124 = scmp.eq.s32.totalorder %s18, 3
    %p125 = por %p123, %p124
    %p127 = scmp.ne.s32.totalorder %s110, %s126
    %p128 = scmp.eq.s32.totalorder %s18, 0
    %p129 = por %p127, %p128
    %s130 = ssub.s32 %s19, %s45
    %s131 = ssub.s32 %s21, %s37
    %s132 = sor.u32 %s130, %s131
    %s133 = ssub.s32 %s20, %s41
    %s134 = sor.u32 %s132, %s133
    %p135 = scmp.eq.s32.totalorder %s134, 0
    %s137 = sadd.s32 %s136, 1
    %s138 = scalar_select %p135, %s136, %s137
    %p141 = pneg %p135
    %p142 = scmp.eq.s32.totalorder %s12, 3
    %p143 = por %p141, %p142
    %p144 = scmp.ne.s32.totalorder %s136, %s139
    %p145 = scmp.eq.s32.totalorder %s12, 0
    %p146 = por %p144, %p145
    %p147 = scmp.ne.s32.totalorder %s136, %s139
    %p148 = scmp.eq.s32.totalorder %s17, 3
    %p149 = por %p147, %p148
    %p150 = scmp.ne.s32.totalorder %s139, %s140
    %p151 = scmp.eq.s32.totalorder %s17, 0
    %p152 = por %p150, %p151
    %p153 = scmp.ne.s32.totalorder %s139, %s140
    %p154 = scmp.eq.s32.totalorder %s18, 3
    %p155 = por %p153, %p154
    %p157 = scmp.ne.s32.totalorder %s140, %s156
    %p158 = scmp.eq.s32.totalorder %s18, 0
    %p159 = por %p157, %p158
    %s160 = ssub.s32 %s19, %s45
    %s161 = ssub.s32 %s21, %s37
    %s162 = sor.u32 %s160, %s161
    %s163 = ssub.s32 %s20, %s41
    %s164 = sor.u32 %s162, %s163
    %p165 = scmp.eq.s32.totalorder %s164, 0
    %s167 = sadd.s32 %s166, 1
    %s168 = scalar_select %p165, %s166, %s167
    %p171 = pneg %p165
    %p172 = scmp.eq.s32.totalorder %s12, 3
    %p173 = por %p171, %p172
    %p174 = scmp.ne.s32.totalorder %s166, %s169
    %p175 = scmp.eq.s32.totalorder %s12, 0
    %p176 = por %p174, %p175
    %p177 = scmp.ne.s32.totalorder %s166, %s169
    %p178 = scmp.eq.s32.totalorder %s17, 3
    %p179 = por %p177, %p178
    %p180 = scmp.ne.s32.totalorder %s169, %s170
    %p181 = scmp.eq.s32.totalorder %s17, 0
    %p182 = por %p180, %p181
    %p183 = scmp.ne.s32.totalorder %s169, %s170
    %p184 = scmp.eq.s32.totalorder %s18, 3
    %p185 = por %p183, %p184
    %p187 = scmp.ne.s32.totalorder %s170, %s186
    %p188 = scmp.eq.s32.totalorder %s18, 0
    %p189 = por %p187, %p188
    %s190 = ssub.s32 %s19, %s45
    %s191 = ssub.s32 %s21, %s37
    %s192 = sor.u32 %s190, %s191
    %s193 = ssub.s32 %s20, %s41
    %s194 = sor.u32 %s192, %s193
    %p195 = scmp.eq.s32.totalorder %s194, 0
    %s197 = sadd.s32 %s196, 1
    %s198 = scalar_select %p195, %s196, %s197
    %p201 = pneg %p195
    %p202 = scmp.eq.s32.totalorder %s12, 3
    %p203 = por %p201, %p202
    %p204 = scmp.ne.s32.totalorder %s196, %s199
    %p205 = scmp.eq.s32.totalorder %s12, 0
    %p206 = por %p204, %p205
    %p207 = scmp.ne.s32.totalorder %s196, %s199
    %p208 = scmp.eq.s32.totalorder %s17, 3
    %p209 = por %p207, %p208
    %p210 = scmp.ne.s32.totalorder %s199, %s200
    %p211 = scmp.eq.s32.totalorder %s17, 0
    %p212 = por %p210, %p211
    %p213 = scmp.ne.s32.totalorder %s199, %s200
    %p214 = scmp.eq.s32.totalorder %s18, 3
    %p215 = por %p213, %p214
    %p217 = scmp.ne.s32.totalorder %s200, %s216
    %p218 = scmp.eq.s32.totalorder %s18, 0
    %p219 = por %p217, %p218
    %p220 = scmp.le.s32.totalorder 1, %s12
    %p221 = scmp.lt.s32.totalorder %s12, 5
    %p222 = pnand %p220, %p221
    %p223 = pneg %p222
    // Predicated region
    $region9: #{torch_model_forward.13} parent=5 // pred_check
      _
    $region10: #{torch_model_forward.13} parent=5 // pred_check_branch
      %225 = sbr.rel (%p222) target = $region12
    $region11: #{torch_model_forward.13} parent=5 // pred_region
      %s226 = ssub.s32 %s12, 1
    $region12: #{torch_model_forward.13} parent=5 // pred_fallthru
      _
    %p227 = scmp.lt.s32.totalorder %s12, 4
    // Predicated region
    $region13: #{torch_model_forward.13} parent=5 // pred_check
      %p228 = pneg %p227
    $region14: #{torch_model_forward.13} parent=5 // pred_check_branch
      %230 = sbr.rel (%p228) target = $region16
    $region15: #{torch_model_forward.13} parent=5 // pred_region
      // Predicated region
      $region17: #{torch_model_forward.13} parent=15 // pred_check
        %p231 = pneg %p62
      $region18: #{torch_model_forward.13} parent=15 // pred_check_branch
        %233 = sbr.rel (%p231) target = $region20
      $region19: #{torch_model_forward.13} parent=15 // pred_region
        %p234 = scmp.lt.s32.totalorder %s19, 1
        %s235 = scalar_select %p234, %s19, 1
        %p236 = scmp.lt.s32.totalorder %s20, 0
        %s237 = scalar_select %p236, %s20, 0
        %p238 = scmp.lt.s32.totalorder %s22, 0
        %s239 = scalar_select %p238, %s22, 0
        %s240 = sadd.s32 %s239, %s237
        %s241 = sadd.s32 %s240, %s235
        %s242 = smul.addr %s241, 4
        %s243 = scalar_lea.vmem %s0, %s242
      $region20: #{torch_model_forward.13} parent=15 // pred_fallthru
        _
      // Predicated region
      $region21: #{torch_model_forward.13} parent=15 // pred_check
        %p244 = pneg %p90
      $region22: #{torch_model_forward.13} parent=15 // pred_check_branch
        %246 = sbr.rel (%p244) target = $region24
      $region23: #{torch_model_forward.13} parent=15 // pred_region
        %s247 = smul.u32 4, %s22
        %p248 = scmp.lt.s32.totalorder %s21, 1
        %s249 = scalar_select %p248, %s21, 1
        %p250 = scmp.lt.s32.totalorder %s247, 3
        %s251 = scalar_select %p250, %s247, 3
        %s252 = smul.addr %s249, 4
        %s253 = sadd.s32 %s251, %s252
        %s254 = smul.addr %s253, 4
        %s255 = scalar_lea.vmem %s1, %s254
        %s256 = smul.u32 4, %s22
      $region24: #{torch_model_forward.13} parent=15 // pred_fallthru
        _
      // Predicated region
      $region25: #{torch_model_forward.13} parent=15 // pred_check
        %p257 = pneg %p116
      $region26: #{torch_model_forward.13} parent=15 // pred_check_branch
        %259 = sbr.rel (%p257) target = $region28
      $region27: #{torch_model_forward.13} parent=15 // pred_region
        %p260 = scmp.lt.s32.totalorder %s21, 1
        %s261 = scalar_select %p260, %s21, 1
        %s262 = smul.addr %s261, 4
        %s263 = scalar_lea.vmem %s2, %s262
      $region28: #{torch_model_forward.13} parent=15 // pred_fallthru
        _
    $region16: #{torch_model_forward.13} parent=5 // pred_fallthru
      _
    %p264 = scmp.le.s32.totalorder 1, %s12
    %p265 = scmp.lt.s32.totalorder %s12, 5
    %p266 = pnand %p264, %p265
    %p267 = pneg %p266
    // Predicated region
    $region29: #{torch_model_forward.13} parent=5 // pred_check
      _
    $region30: #{torch_model_forward.13} parent=5 // pred_check_branch
      %269 = sbr.rel (%p266) target = $region32
    $region31: #{torch_model_forward.13} parent=5 // pred_region
      %s270 = ssub.s32 %s12, 1
      %p271 = scmp.lt.s32.totalorder %s23, 1
      %s272 = scalar_select %p271, %s23, 1
      %p273 = scmp.lt.s32.totalorder %s24, 0
      %s274 = scalar_select %p273, %s24, 0
      %p275 = scmp.lt.s32.totalorder %s26, 0
      %s276 = scalar_select %p275, %s26, 0
      %s277 = sadd.s32 %s276, %s274
      %s278 = sadd.s32 %s277, %s272
      %s279 = smul.addr %s278, 4
      %s280 = scalar_lea.vmem %s0, %s279
      %p281 = pneg %p68
      %p282 = pneg %p65
      %s283 = smul.u32 4, %s26
      %p284 = scmp.lt.s32.totalorder %s25, 1
      %s285 = scalar_select %p284, %s25, 1
      %p286 = scmp.lt.s32.totalorder %s283, 3
      %s287 = scalar_select %p286, %s283, 3
      %s288 = smul.addr %s285, 4
      %s289 = sadd.s32 %s287, %s288
      %s290 = smul.addr %s289, 4
      %s291 = scalar_lea.vmem %s1, %s290
      %p292 = pneg %p96
      %p293 = pneg %p93
      %p294 = scmp.lt.s32.totalorder %s25, 1
      %s295 = scalar_select %p294, %s25, 1
      %s296 = smul.addr %s295, 4
      %s297 = scalar_lea.vmem %s2, %s296
      %p298 = pneg %p122
      %p299 = pneg %p119
      %p300 = pneg %p152
      %p301 = pneg %p149
      %p302 = scmp.lt.s32.totalorder %s23, 1
      %s303 = scalar_select %p302, %s23, 1
      %p304 = scmp.lt.s32.totalorder %s25, 1
      %s305 = scalar_select %p304, %s25, 1
      %p306 = scmp.lt.s32.totalorder %s24, 0
      %s307 = scalar_select %p306, %s24, 0
      %s308 = sadd.s32 %s307, %s305
      %s309 = smul.addr %s303, 2
      %s310 = sadd.s32 %s308, %s309
      %s311 = smul.addr %s310, 4
      %s312 = scalar_lea.vmem %s3, %s311
      %p313 = pneg %p182
      %p314 = pneg %p179
      %p315 = scmp.lt.s32.totalorder %s23, 1
      %s316 = scalar_select %p315, %s23, 1
      %p317 = scmp.lt.s32.totalorder %s25, 1
      %s318 = scalar_select %p317, %s25, 1
      %p319 = scmp.lt.s32.totalorder %s24, 0
      %s320 = scalar_select %p319, %s24, 0
      %s321 = sadd.s32 %s320, %s318
      %s322 = smul.addr %s316, 2
      %s323 = sadd.s32 %s321, %s322
      %s324 = smul.addr %s323, 4
      %s325 = scalar_lea.vmem %s4, %s324
      %p326 = pneg %p212
      %p327 = pneg %p209
      %p328 = scmp.lt.s32.totalorder %s23, 1
      %s329 = scalar_select %p328, %s23, 1
      %p330 = scmp.lt.s32.totalorder %s25, 1
      %s331 = scalar_select %p330, %s25, 1
      %p332 = scmp.lt.s32.totalorder %s24, 0
      %s333 = scalar_select %p332, %s24, 0
      %s334 = sadd.s32 %s333, %s331
      %s335 = smul.addr %s329, 2
      %s336 = sadd.s32 %s334, %s335
      %s337 = smul.addr %s336, 4
      %s338 = scalar_lea.vmem %s5, %s337
      %p339 = scmp.lt.s32.totalorder %s23, 1
      %s340 = scalar_select %p339, %s23, 1
      %p341 = scmp.lt.s32.totalorder %s24, 0
      %s342 = scalar_select %p341, %s24, 0
      %p343 = scmp.lt.s32.totalorder %s26, 0
      %s344 = scalar_select %p343, %s26, 0
      %s345 = sadd.s32 %s344, %s342
      %s346 = sadd.s32 %s345, %s340
      %s347 = smul.addr %s346, 4
      %s348 = scalar_lea.vmem %s0, %s347
      %s349 = smul.u32 4, %s26
      %p350 = scmp.lt.s32.totalorder %s25, 1
      %s351 = scalar_select %p350, %s25, 1
      %p352 = scmp.lt.s32.totalorder %s349, 3
      %s353 = scalar_select %p352, %s349, 3
      %s354 = smul.addr %s351, 4
      %s355 = sadd.s32 %s353, %s354
      %s356 = smul.addr %s355, 4
      %s357 = scalar_lea.vmem %s1, %s356
      %s358 = smul.u32 4, %s26
      %p359 = scmp.lt.s32.totalorder %s25, 1
      %s360 = scalar_select %p359, %s25, 1
      %s361 = smul.addr %s360, 4
      %s362 = scalar_lea.vmem %s2, %s361
      %p363 = scmp.lt.s32.totalorder %s23, 1
      %s364 = scalar_select %p363, %s23, 1
      %p365 = scmp.lt.s32.totalorder %s25, 1
      %s366 = scalar_select %p365, %s25, 1
      %p367 = scmp.lt.s32.totalorder %s24, 0
      %s368 = scalar_select %p367, %s24, 0
      %s369 = sadd.s32 %s368, %s366
      %s370 = smul.addr %s364, 2
      %s371 = sadd.s32 %s369, %s370
      %s372 = smul.addr %s371, 4
      %s373 = scalar_lea.vmem %s3, %s372
      %p374 = scmp.lt.s32.totalorder %s23, 1
      %s375 = scalar_select %p374, %s23, 1
      %p376 = scmp.lt.s32.totalorder %s25, 1
      %s377 = scalar_select %p376, %s25, 1
      %p378 = scmp.lt.s32.totalorder %s24, 0
      %s379 = scalar_select %p378, %s24, 0
      %s380 = sadd.s32 %s379, %s377
      %s381 = smul.addr %s375, 2
      %s382 = sadd.s32 %s380, %s381
      %s383 = smul.addr %s382, 4
      %s384 = scalar_lea.vmem %s4, %s383
      %p385 = scmp.lt.s32.totalorder %s23, 1
      %s386 = scalar_select %p385, %s23, 1
      %p387 = scmp.lt.s32.totalorder %s25, 1
      %s388 = scalar_select %p387, %s25, 1
      %p389 = scmp.lt.s32.totalorder %s24, 0
      %s390 = scalar_select %p389, %s24, 0
      %s391 = sadd.s32 %s390, %s388
      %s392 = smul.addr %s386, 2
      %s393 = sadd.s32 %s391, %s392
      %s394 = smul.addr %s393, 4
      %s395 = scalar_lea.vmem %s5, %s394
      %p397 = scmp.eq.s32.totalorder %s26, 0
      // Predicated region
      $region33: #{torch_model_forward.13} parent=31 // pred_check
        %p398 = pneg %p397
      $region34: #{torch_model_forward.13} parent=31 // pred_check_branch
        %400 = sbr.rel (%p398) target = $region36
      $region35: #{torch_model_forward.13} parent=31 // pred_region
        %vm401 = vcmask 392192
        %402 = vst.msk [vmem:[#allocation2] sm:$0xff] %vm401, 0.0
      $region36: #{torch_model_forward.13} parent=31 // pred_fallthru
        _
      %v403 = vld [vmem:[#allocation2] sm:$0xff]
      %v404 = vld [vmem:[%s348] sm:$0xf]
      %v405 = vld [vmem:[%s357] sm:$0xf]
      %v406 = vld [vmem:[%s357 + $0x4] sm:$0xf]
      %v407 = vld [vmem:[%s357 + $0x8] sm:$0xf]
      %v408 = vld [vmem:[%s357 + $0xc] sm:$0xf]
      %v413 = vunpack.c.l.b16 %v405
      %v414 = vunpack.c.l.b16 %v406
      %v415 = vunpack.c.l.b16 %v407
      %v416 = vunpack.c.l.b16 %v408
      %v417 = vpack.c.b16 %v414, %v413
      %v418 = vpack.c.b16 %v416, %v415
      %vm421 = vcmask 261120
      %v423 = vsel %vm421, %v404, 0
      %425 = vmatpush.bf16.msra.mxu0 0
      %426 = vmatpush.bf16.msra.mxu0 0
      %427 = vmatpush.bf16.msra.mxu0 0
      %428 = vmatpush.bf16.msra.mxu0 0
      %429 = vmatpush.bf16.msra.mxu0 0
      %430 = vmatpush.bf16.msra.mxu0 0
      %431 = vmatpush.bf16.msra.mxu0 %v418
      %432 = vmatpush.bf16.msra.mxu0 %v417
      %433 = vmatmul.bf16.gmra.mxu0 %v423
      %v434 = vpop.f32.mrf.mxu0
      %v435 = vadd.f32 0.0, %v434
      %v436 = vpop.f32.mrf.mxu0
      %437 = vdwg.mxu0
      %v438 = vadd.f32 %v403, %v435
      %vm439 = vcmask 392192
      %440 = vst.msk [vmem:[#allocation2] sm:$0xff] %vm439, %v438
      // Predicated region
      $region37: #{torch_model_forward.13} parent=31 // pred_check
        %p441 = pneg %p397
      $region38: #{torch_model_forward.13} parent=31 // pred_check_branch
        %443 = sbr.rel (%p441) target = $region40
      $region39: #{torch_model_forward.13} parent=31 // pred_region
        %v444 = vld [vmem:[%s362] sm:$0x7]
        %v445 = vld [vmem:[#allocation2] sm:$0xff]
        %v446 = vperm.slane %v444, 0
        %v447 = vadd.f32 %v445, %v446
        %v448 = vpack.c.bf16 %v447, %v447
        %vm449 = vcmask 125952
        %450 = vst.msk [vmem:[%s373] sm:$0xf] %vm449, %v448
        %v451 = vld [vmem:[#allocation2] sm:$0xff]
        %v452 = vperm.slane %v444, 1
        %454 = vrot.lane.b32.xlu0 %v452, 16
        %v455 = vpop.permute.xlu0 %454
        %v457 = vadd.f32 %v451, %v455
        %v458 = vpack.c.bf16 %v457, %v457
        %460 = vrot.lane.b32.xlu0 %v458, 112
        %v461 = vpop.permute.xlu0 %460
        %463 = vst.msk [vmem:[%s384] sm:$0xf] %vm449, %v461
        %v464 = vld [vmem:[#allocation2] sm:$0xff]
        %v465 = vperm.slane %v444, 2
        %467 = vrot.lane.b32.xlu0 %v465, 32
        %v468 = vpop.permute.xlu0 %467
        %v470 = vadd.f32 %v464, %v468
        %v471 = vpack.c.bf16 %v470, %v470
        %473 = vrot.lane.b32.xlu0 %v471, 96
        %v474 = vpop.permute.xlu0 %473
        %476 = vst.msk [vmem:[%s395] sm:$0xf] %vm449, %v474
      $region40: #{torch_model_forward.13} parent=31 // pred_fallthru
        _
      %p477 = scmp.lt.s32.totalorder %s23, 1
      %s478 = scalar_select %p477, %s23, 1
      %p479 = scmp.lt.s32.totalorder %s25, 1
      %s480 = scalar_select %p479, %s25, 1
      %p481 = scmp.lt.s32.totalorder %s24, 0
      %s482 = scalar_select %p481, %s24, 0
      %s483 = sadd.s32 %s482, %s480
      %s484 = smul.addr %s478, 2
      %s485 = sadd.s32 %s483, %s484
      %s486 = smul.addr %s485, 4
      %s487 = scalar_lea.vmem %s3, %s486
      %p488 = scmp.lt.s32.totalorder %s23, 1
      %s489 = scalar_select %p488, %s23, 1
      %p490 = scmp.lt.s32.totalorder %s25, 1
      %s491 = scalar_select %p490, %s25, 1
      %p492 = scmp.lt.s32.totalorder %s24, 0
      %s493 = scalar_select %p492, %s24, 0
      %s494 = sadd.s32 %s493, %s491
      %s495 = smul.addr %s489, 2
      %s496 = sadd.s32 %s494, %s495
      %s497 = smul.addr %s496, 4
      %s498 = scalar_lea.vmem %s4, %s497
      %p499 = scmp.lt.s32.totalorder %s23, 1
      %s500 = scalar_select %p499, %s23, 1
      %p501 = scmp.lt.s32.totalorder %s25, 1
      %s502 = scalar_select %p501, %s25, 1
      %p503 = scmp.lt.s32.totalorder %s24, 0
      %s504 = scalar_select %p503, %s24, 0
      %s505 = sadd.s32 %s504, %s502
      %s506 = smul.addr %s500, 2
      %s507 = sadd.s32 %s505, %s506
      %s508 = smul.addr %s507, 4
      %s509 = scalar_lea.vmem %s5, %s508
      // Predicated region
      $region41: #{torch_model_forward.13} parent=31 // pred_check
        %p510 = pneg %p149
      $region42: #{torch_model_forward.13} parent=31 // pred_check_branch
        %512 = sbr.rel (%p510) target = $region44
      $region43: #{torch_model_forward.13} parent=31 // pred_region
        _
      $region44: #{torch_model_forward.13} parent=31 // pred_fallthru
        _
      // Predicated region
      $region45: #{torch_model_forward.13} parent=31 // pred_check
        %p513 = pneg %p179
      $region46: #{torch_model_forward.13} parent=31 // pred_check_branch
        %515 = sbr.rel (%p513) target = $region48
      $region47: #{torch_model_forward.13} parent=31 // pred_region
        _
      $region48: #{torch_model_forward.13} parent=31 // pred_fallthru
        _
      // Predicated region
      $region49: #{torch_model_forward.13} parent=31 // pred_check
        %p516 = pneg %p209
      $region50: #{torch_model_forward.13} parent=31 // pred_check_branch
        %518 = sbr.rel (%p516) target = $region52
      $region51: #{torch_model_forward.13} parent=31 // pred_region
        _
      $region52: #{torch_model_forward.13} parent=31 // pred_fallthru
        _
    $region32: #{torch_model_forward.13} parent=5 // pred_fallthru
      _
    %p519 = scmp.le.s32.totalorder 2, %s12
    // Predicated region
    $region53: #{torch_model_forward.13} parent=5 // pred_check
      %p520 = pneg %p519
    $region54: #{torch_model_forward.13} parent=5 // pred_check_branch
      %522 = sbr.rel (%p520) target = $region56
    $region55: #{torch_model_forward.13} parent=5 // pred_region
      %s523 = ssub.s32 %s12, 2
      // Predicated region
      $region57: #{torch_model_forward.13} parent=55 // pred_check
        %p524 = pneg %p155
      $region58: #{torch_model_forward.13} parent=55 // pred_check_branch
        %526 = sbr.rel (%p524) target = $region60
      $region59: #{torch_model_forward.13} parent=55 // pred_region
        %p527 = scmp.lt.s32.totalorder %s27, 1
        %s528 = scalar_select %p527, %s27, 1
        %p529 = scmp.lt.s32.totalorder %s29, 1
        %s530 = scalar_select %p529, %s29, 1
        %p531 = scmp.lt.s32.totalorder %s28, 0
        %s532 = scalar_select %p531, %s28, 0
        %s533 = sadd.s32 %s532, %s530
        %s534 = smul.addr %s528, 2
        %s535 = sadd.s32 %s533, %s534
        %s536 = smul.addr %s535, 4
        %s537 = scalar_lea.vmem %s3, %s536
      $region60: #{torch_model_forward.13} parent=55 // pred_fallthru
        _
      // Predicated region
      $region61: #{torch_model_forward.13} parent=55 // pred_check
        %p538 = pneg %p185
      $region62: #{torch_model_forward.13} parent=55 // pred_check_branch
        %540 = sbr.rel (%p538) target = $region64
      $region63: #{torch_model_forward.13} parent=55 // pred_region
        %p541 = scmp.lt.s32.totalorder %s27, 1
        %s542 = scalar_select %p541, %s27, 1
        %p543 = scmp.lt.s32.totalorder %s29, 1
        %s544 = scalar_select %p543, %s29, 1
        %p545 = scmp.lt.s32.totalorder %s28, 0
        %s546 = scalar_select %p545, %s28, 0
        %s547 = sadd.s32 %s546, %s544
        %s548 = smul.addr %s542, 2
        %s549 = sadd.s32 %s547, %s548
        %s550 = smul.addr %s549, 4
        %s551 = scalar_lea.vmem %s4, %s550
      $region64: #{torch_model_forward.13} parent=55 // pred_fallthru
        _
      // Predicated region
      $region65: #{torch_model_forward.13} parent=55 // pred_check
        %p552 = pneg %p215
      $region66: #{torch_model_forward.13} parent=55 // pred_check_branch
        %554 = sbr.rel (%p552) target = $region68
      $region67: #{torch_model_forward.13} parent=55 // pred_region
        %p555 = scmp.lt.s32.totalorder %s27, 1
        %s556 = scalar_select %p555, %s27, 1
        %p557 = scmp.lt.s32.totalorder %s29, 1
        %s558 = scalar_select %p557, %s29, 1
        %p559 = scmp.lt.s32.totalorder %s28, 0
        %s560 = scalar_select %p559, %s28, 0
        %s561 = sadd.s32 %s560, %s558
        %s562 = smul.addr %s556, 2
        %s563 = sadd.s32 %s561, %s562
        %s564 = smul.addr %s563, 4
        %s565 = scalar_lea.vmem %s5, %s564
      $region68: #{torch_model_forward.13} parent=55 // pred_fallthru
        _
    $region56: #{torch_model_forward.13} parent=5 // pred_fallthru
      _
  $region6: #{torch_model_forward.13} parent=0 // loop_footer
    %s16 = sadd.s32 1, %s12
  $region7: #{torch_model_forward.13} parent=0 // loop_footer_branch
    %11 = sbr.rel target = $region3
  $region8: #{torch_model_forward.13} parent=0 // loop_exit
    _

// kernel: torch_model_forward.14
$region0: #{torch_model_forward.14}
  #allocation0 [shape = 'u32[]', space=smem, size = 0x4, offset = 0x4, fixed_abs, tag = 'smem constant byte address 0x4 - core index']
  #allocation1 [shape = 'u32[72,128]{1,0:T(1,128)}', space=vmem, size = 0x9000, scoped, tag = 'internal scratch']
  %s0 = inlined_call_operand.vmem [shape: bf16[2,2,8,16], index: 0, kind: input, shape index: {}]
  %s1 = inlined_call_operand.vmem [shape: bf16[2,2,8,16], index: 1, kind: input, shape index: {}]
  %s2 = inlined_call_operand.vmem [shape: bf16[2,2,8,16], index: 2, kind: input, shape index: {}]
  %s3 = inlined_call_operand.vmem [shape: f32[2,1,8], index: 3, kind: input, shape index: {}]
  %s4 = inlined_call_operand.vmem [shape: bf16[2,2,8,16], index: 4, kind: output, shape index: {}]
  %s5 = sld [smem:[#allocation0]]
  $region49: #{torch_model_forward.14} parent=0
    _
  %s7 = ssub.s32 1, %s5
  %s8 = scalar_select 0, %s7, %s5
  loop: start=0, step=1, limit=6
  $region2: #{torch_model_forward.14} parent=0 // loop_pre_header
    _
  $region3: #{torch_model_forward.14} parent=0 // loop_header
    %s10 = sphi 0, %s14
    %p11 = scmp.ge.s32.totalorder %s10, 6
    %s17 = sphi 0, %s29
    %s18 = sphi 0, %s25
    %s19 = sphi 0, %s17
    %s20 = sphi 0, %s18
    %s21 = sphi 0, %s19
    %s22 = sphi 0, %s20
    %s34 = sphi 0, %s36
    %s37 = sphi 0, %s34
    %s38 = sphi 0, %s37
    %s54 = sphi 0, %s38
    %s62 = sphi 0, %s64
    %s65 = sphi 0, %s62
    %s66 = sphi 0, %s65
    %s82 = sphi 0, %s66
    %s90 = sphi 0, %s92
    %s93 = sphi 0, %s90
    %s94 = sphi 0, %s93
    %s110 = sphi 0, %s94
    %s116 = sphi 0, %s118
    %s119 = sphi 0, %s116
    %s120 = sphi 0, %s119
    %s136 = sphi 0, %s120
    %s144 = sphi 0, %s146
    %s147 = sphi 0, %s144
    %s148 = sphi 0, %s147
    %s164 = sphi 0, %s148
  $region4: #{torch_model_forward.14} parent=0 // loop_header_branch
    %13 = sbr.rel (%p11) target = $region8
  $region5: #{torch_model_forward.14} parent=0 // loop_body
    %s15 = ssub.s32 %s10, 1
    %s16 = ssub.s32 %s10, 2
    %s23 = sadd.s32 1, %s18
    %p24 = scmp.ge.s32.totalorder %s23, 2
    %s25 = scalar_select %p24, 0, %s23
    %s26 = sadd.s32 1, %s17
    %s27 = scalar_select %p24, %s26, %s17
    %p28 = scmp.ge.s32.totalorder %s27, 2
    %s29 = scalar_select %p28, 0, %s27
    %s30 = ssub.s32 %s17, %s29
    %s31 = ssub.s32 %s18, %s25
    %s32 = sor.u32 %s30, %s31
    %p33 = scmp.eq.s32.totalorder %s32, 0
    %s35 = sadd.s32 %s34, 1
    %s36 = scalar_select %p33, %s34, %s35
    %p39 = pneg %p33
    %p40 = scmp.eq.s32.totalorder %s10, 3
    %p41 = por %p39, %p40
    %p42 = scmp.ne.s32.totalorder %s34, %s37
    %p43 = scmp.eq.s32.totalorder %s10, 0
    %p44 = por %p42, %p43
    %p45 = scmp.ne.s32.totalorder %s34, %s37
    %p46 = scmp.eq.s32.totalorder %s15, 3
    %p47 = por %p45, %p46
    %p48 = scmp.ne.s32.totalorder %s37, %s38
    %p49 = scmp.eq.s32.totalorder %s15, 0
    %p50 = por %p48, %p49
    %p51 = scmp.ne.s32.totalorder %s37, %s38
    %p52 = scmp.eq.s32.totalorder %s16, 3
    %p53 = por %p51, %p52
    %p55 = scmp.ne.s32.totalorder %s38, %s54
    %p56 = scmp.eq.s32.totalorder %s16, 0
    %p57 = por %p55, %p56
    %s58 = ssub.s32 %s17, %s29
    %s59 = ssub.s32 %s18, %s25
    %s60 = sor.u32 %s58, %s59
    %p61 = scmp.eq.s32.totalorder %s60, 0
    %s63 = sadd.s32 %s62, 1
    %s64 = scalar_select %p61, %s62, %s63
    %p67 = pneg %p61
    %p68 = scmp.eq.s32.totalorder %s10, 3
    %p69 = por %p67, %p68
    %p70 = scmp.ne.s32.totalorder %s62, %s65
    %p71 = scmp.eq.s32.totalorder %s10, 0
    %p72 = por %p70, %p71
    %p73 = scmp.ne.s32.totalorder %s62, %s65
    %p74 = scmp.eq.s32.totalorder %s15, 3
    %p75 = por %p73, %p74
    %p76 = scmp.ne.s32.totalorder %s65, %s66
    %p77 = scmp.eq.s32.totalorder %s15, 0
    %p78 = por %p76, %p77
    %p79 = scmp.ne.s32.totalorder %s65, %s66
    %p80 = scmp.eq.s32.totalorder %s16, 3
    %p81 = por %p79, %p80
    %p83 = scmp.ne.s32.totalorder %s66, %s82
    %p84 = scmp.eq.s32.totalorder %s16, 0
    %p85 = por %p83, %p84
    %s86 = ssub.s32 %s17, %s29
    %s87 = ssub.s32 %s18, %s25
    %s88 = sor.u32 %s86, %s87
    %p89 = scmp.eq.s32.totalorder %s88, 0
    %s91 = sadd.s32 %s90, 1
    %s92 = scalar_select %p89, %s90, %s91
    %p95 = pneg %p89
    %p96 = scmp.eq.s32.totalorder %s10, 3
    %p97 = por %p95, %p96
    %p98 = scmp.ne.s32.totalorder %s90, %s93
    %p99 = scmp.eq.s32.totalorder %s10, 0
    %p100 = por %p98, %p99
    %p101 = scmp.ne.s32.totalorder %s90, %s93
    %p102 = scmp.eq.s32.totalorder %s15, 3
    %p103 = por %p101, %p102
    %p104 = scmp.ne.s32.totalorder %s93, %s94
    %p105 = scmp.eq.s32.totalorder %s15, 0
    %p106 = por %p104, %p105
    %p107 = scmp.ne.s32.totalorder %s93, %s94
    %p108 = scmp.eq.s32.totalorder %s16, 3
    %p109 = por %p107, %p108
    %p111 = scmp.ne.s32.totalorder %s94, %s110
    %p112 = scmp.eq.s32.totalorder %s16, 0
    %p113 = por %p111, %p112
    %s114 = ssub.s32 %s17, %s29
    %p115 = scmp.eq.s32.totalorder %s114, 0
    %s117 = sadd.s32 %s116, 1
    %s118 = scalar_select %p115, %s116, %s117
    %p121 = pneg %p115
    %p122 = scmp.eq.s32.totalorder %s10, 3
    %p123 = por %p121, %p122
    %p124 = scmp.ne.s32.totalorder %s116, %s119
    %p125 = scmp.eq.s32.totalorder %s10, 0
    %p126 = por %p124, %p125
    %p127 = scmp.ne.s32.totalorder %s116, %s119
    %p128 = scmp.eq.s32.totalorder %s15, 3
    %p129 = por %p127, %p128
    %p130 = scmp.ne.s32.totalorder %s119, %s120
    %p131 = scmp.eq.s32.totalorder %s15, 0
    %p132 = por %p130, %p131
    %p133 = scmp.ne.s32.totalorder %s119, %s120
    %p134 = scmp.eq.s32.totalorder %s16, 3
    %p135 = por %p133, %p134
    %p137 = scmp.ne.s32.totalorder %s120, %s136
    %p138 = scmp.eq.s32.totalorder %s16, 0
    %p139 = por %p137, %p138
    %s140 = ssub.s32 %s17, %s29
    %s141 = ssub.s32 %s18, %s25
    %s142 = sor.u32 %s140, %s141
    %p143 = scmp.eq.s32.totalorder %s142, 0
    %s145 = sadd.s32 %s144, 1
    %s146 = scalar_select %p143, %s144, %s145
    %p149 = pneg %p143
    %p150 = scmp.eq.s32.totalorder %s10, 3
    %p151 = por %p149, %p150
    %p152 = scmp.ne.s32.totalorder %s144, %s147
    %p153 = scmp.eq.s32.totalorder %s10, 0
    %p154 = por %p152, %p153
    %p155 = scmp.ne.s32.totalorder %s144, %s147
    %p156 = scmp.eq.s32.totalorder %s15, 3
    %p157 = por %p155, %p156
    %p158 = scmp.ne.s32.totalorder %s147, %s148
    %p159 = scmp.eq.s32.totalorder %s15, 0
    %p160 = por %p158, %p159
    %p161 = scmp.ne.s32.totalorder %s147, %s148
    %p162 = scmp.eq.s32.totalorder %s16, 3
    %p163 = por %p161, %p162
    %p165 = scmp.ne.s32.totalorder %s148, %s164
    %p166 = scmp.eq.s32.totalorder %s16, 0
    %p167 = por %p165, %p166
    %p168 = scmp.le.s32.totalorder 1, %s10
    %p169 = scmp.lt.s32.totalorder %s10, 5
    %p170 = pnand %p168, %p169
    %p171 = pneg %p170
    // Predicated region
    $region9: #{torch_model_forward.14} parent=5 // pred_check
      _
    $region10: #{torch_model_forward.14} parent=5 // pred_check_branch
      %173 = sbr.rel (%p170) target = $region12
    $region11: #{torch_model_forward.14} parent=5 // pred_region
      %s174 = ssub.s32 %s10, 1
    $region12: #{torch_model_forward.14} parent=5 // pred_fallthru
      _
    %p175 = scmp.lt.s32.totalorder %s10, 4
    // Predicated region
    $region13: #{torch_model_forward.14} parent=5 // pred_check
      %p176 = pneg %p175
    $region14: #{torch_model_forward.14} parent=5 // pred_check_branch
      %178 = sbr.rel (%p176) target = $region16
    $region15: #{torch_model_forward.14} parent=5 // pred_region
      // Predicated region
      $region17: #{torch_model_forward.14} parent=15 // pred_check
        %p179 = pneg %p44
      $region18: #{torch_model_forward.14} parent=15 // pred_check_branch
        %181 = sbr.rel (%p179) target = $region20
      $region19: #{torch_model_forward.14} parent=15 // pred_region
        %p182 = scmp.lt.s32.totalorder %s17, 1
        %s183 = scalar_select %p182, %s17, 1
        %p184 = scmp.lt.s32.totalorder %s18, 1
        %s185 = scalar_select %p184, %s18, 1
        %s186 = smul.addr %s183, 2
        %s187 = sadd.s32 %s185, %s186
        %s188 = smul.addr %s187, 4
        %s189 = scalar_lea.vmem %s0, %s188
      $region20: #{torch_model_forward.14} parent=15 // pred_fallthru
        _
      // Predicated region
      $region21: #{torch_model_forward.14} parent=15 // pred_check
        %p190 = pneg %p72
      $region22: #{torch_model_forward.14} parent=15 // pred_check_branch
        %192 = sbr.rel (%p190) target = $region24
      $region23: #{torch_model_forward.14} parent=15 // pred_region
        %p193 = scmp.lt.s32.totalorder %s17, 1
        %s194 = scalar_select %p193, %s17, 1
        %p195 = scmp.lt.s32.totalorder %s18, 1
        %s196 = scalar_select %p195, %s18, 1
        %s197 = smul.addr %s194, 2
        %s198 = sadd.s32 %s196, %s197
        %s199 = smul.addr %s198, 4
        %s200 = scalar_lea.vmem %s1, %s199
      $region24: #{torch_model_forward.14} parent=15 // pred_fallthru
        _
      // Predicated region
      $region25: #{torch_model_forward.14} parent=15 // pred_check
        %p201 = pneg %p100
      $region26: #{torch_model_forward.14} parent=15 // pred_check_branch
        %203 = sbr.rel (%p201) target = $region28
      $region27: #{torch_model_forward.14} parent=15 // pred_region
        %p204 = scmp.lt.s32.totalorder %s17, 1
        %s205 = scalar_select %p204, %s17, 1
        %p206 = scmp.lt.s32.totalorder %s18, 1
        %s207 = scalar_select %p206, %s18, 1
        %s208 = smul.addr %s205, 2
        %s209 = sadd.s32 %s207, %s208
        %s210 = smul.addr %s209, 4
        %s211 = scalar_lea.vmem %s2, %s210
      $region28: #{torch_model_forward.14} parent=15 // pred_fallthru
        _
      // Predicated region
      $region29: #{torch_model_forward.14} parent=15 // pred_check
        %p212 = pneg %p126
      $region30: #{torch_model_forward.14} parent=15 // pred_check_branch
        %214 = sbr.rel (%p212) target = $region32
      $region31: #{torch_model_forward.14} parent=15 // pred_region
        %p215 = scmp.lt.s32.totalorder %s17, 1
        %s216 = scalar_select %p215, %s17, 1
        %s217 = scalar_lea.vmem %s3, %s216
      $region32: #{torch_model_forward.14} parent=15 // pred_fallthru
        _
    $region16: #{torch_model_forward.14} parent=5 // pred_fallthru
      _
    %p218 = scmp.le.s32.totalorder 1, %s10
    %p219 = scmp.lt.s32.totalorder %s10, 5
    %p220 = pnand %p218, %p219
    %p221 = pneg %p220
    // Predicated region
    $region33: #{torch_model_forward.14} parent=5 // pred_check
      _
    $region34: #{torch_model_forward.14} parent=5 // pred_check_branch
      %223 = sbr.rel (%p220) target = $region36
    $region35: #{torch_model_forward.14} parent=5 // pred_region
      %s224 = ssub.s32 %s10, 1
      %p225 = scmp.lt.s32.totalorder %s19, 1
      %s226 = scalar_select %p225, %s19, 1
      %p227 = scmp.lt.s32.totalorder %s20, 1
      %s228 = scalar_select %p227, %s20, 1
      %s229 = smul.addr %s226, 2
      %s230 = sadd.s32 %s228, %s229
      %s231 = smul.addr %s230, 4
      %s232 = scalar_lea.vmem %s0, %s231
      %p233 = pneg %p50
      %p234 = pneg %p47
      %p235 = scmp.lt.s32.totalorder %s19, 1
      %s236 = scalar_select %p235, %s19, 1
      %p237 = scmp.lt.s32.totalorder %s20, 1
      %s238 = scalar_select %p237, %s20, 1
      %s239 = smul.addr %s236, 2
      %s240 = sadd.s32 %s238, %s239
      %s241 = smul.addr %s240, 4
      %s242 = scalar_lea.vmem %s1, %s241
      %p243 = pneg %p78
      %p244 = pneg %p75
      %p245 = scmp.lt.s32.totalorder %s19, 1
      %s246 = scalar_select %p245, %s19, 1
      %p247 = scmp.lt.s32.totalorder %s20, 1
      %s248 = scalar_select %p247, %s20, 1
      %s249 = smul.addr %s246, 2
      %s250 = sadd.s32 %s248, %s249
      %s251 = smul.addr %s250, 4
      %s252 = scalar_lea.vmem %s2, %s251
      %p253 = pneg %p106
      %p254 = pneg %p103
      %p255 = scmp.lt.s32.totalorder %s19, 1
      %s256 = scalar_select %p255, %s19, 1
      %s257 = scalar_lea.vmem %s3, %s256
      %p258 = pneg %p132
      %p259 = pneg %p129
      %p260 = pneg %p160
      %p261 = pneg %p157
      %p262 = scmp.lt.s32.totalorder %s19, 1
      %s263 = scalar_select %p262, %s19, 1
      %p264 = scmp.lt.s32.totalorder %s20, 1
      %s265 = scalar_select %p264, %s20, 1
      %s266 = smul.addr %s263, 2
      %s267 = sadd.s32 %s265, %s266
      %s268 = smul.addr %s267, 4
      %s269 = scalar_lea.vmem %s4, %s268
      %p270 = scmp.lt.s32.totalorder %s19, 1
      %s271 = scalar_select %p270, %s19, 1
      %p272 = scmp.lt.s32.totalorder %s20, 1
      %s273 = scalar_select %p272, %s20, 1
      %s274 = smul.addr %s271, 2
      %s275 = sadd.s32 %s273, %s274
      %s276 = smul.addr %s275, 4
      %s277 = scalar_lea.vmem %s0, %s276
      %p278 = scmp.lt.s32.totalorder %s19, 1
      %s279 = scalar_select %p278, %s19, 1
      %p280 = scmp.lt.s32.totalorder %s20, 1
      %s281 = scalar_select %p280, %s20, 1
      %s282 = smul.addr %s279, 2
      %s283 = sadd.s32 %s281, %s282
      %s284 = smul.addr %s283, 4
      %s285 = scalar_lea.vmem %s1, %s284
      %p286 = scmp.lt.s32.totalorder %s19, 1
      %s287 = scalar_select %p286, %s19, 1
      %p288 = scmp.lt.s32.totalorder %s20, 1
      %s289 = scalar_select %p288, %s20, 1
      %s290 = smul.addr %s287, 2
      %s291 = sadd.s32 %s289, %s290
      %s292 = smul.addr %s291, 4
      %s293 = scalar_lea.vmem %s2, %s292
      %p294 = scmp.lt.s32.totalorder %s19, 1
      %s295 = scalar_select %p294, %s19, 1
      %s296 = scalar_lea.vmem %s3, %s295
      %p297 = scmp.lt.s32.totalorder %s19, 1
      %s298 = scalar_select %p297, %s19, 1
      %p299 = scmp.lt.s32.totalorder %s20, 1
      %s300 = scalar_select %p299, %s20, 1
      %s301 = smul.addr %s298, 2
      %s302 = sadd.s32 %s300, %s301
      %s303 = smul.addr %s302, 4
      %s304 = scalar_lea.vmem %s4, %s303
      %v306 = vld [vmem:[%s277] sm:$0xf]
      %v307 = vld [vmem:[%s285] sm:$0xf]
      %v308 = vld [vmem:[%s293] sm:$0xf]
      %v309 = vld [vmem:[%s296] sm:$0x1]
      %vm310 = vcmask 130048
      %v312 = vsel %vm310, %v306, 0
      %v315 = vsel %vm310, %v307, 0
      %317 = vmatpush.bf16.xpose.msra.mxu0 0
      %318 = vmatpush.bf16.xpose.msra.mxu0 0
      %319 = vmatpush.bf16.xpose.msra.mxu0 0
      %320 = vmatpush.bf16.xpose.msra.mxu0 0
      %321 = vmatpush.bf16.xpose.msra.mxu0 0
      %322 = vmatpush.bf16.xpose.msra.mxu0 0
      %323 = vmatpush.bf16.xpose.msra.mxu0 0
      %324 = vmatpush.bf16.xpose.msra.mxu0 %v315
      %325 = vmatmul.bf16.gmra.mxu0 %v312
      %v326 = vpop.f32.mrf.mxu0
      %v327 = vadd.f32 0.0, %v326
      %v328 = vpop.f32.mrf.mxu0
      %329 = vdwg.mxu0
      %v330 = vmul.f32 %v327, 0.25
      %v332 = vperm.slane %v309, 0
      %v334 = vadd.f32 %v330, %v332
      %vm335 = vcmask 64512
      %v336 = vsel %vm335, %v334, -inf
      %337 = vmax.xlane.f32.xlu0 %v336
      %v338 = vpop.xlane.xlu0 %337
      %v339 = vsub.f32 %v334, %v338
      %v340 = vmul.f32 %v339, 1.442695
      %v341 = vpow.pop %v340
      %v342 = vsel %vm335, %v341, 0.0
      %343 = vadd.xlane.f32.xlu0 %v342
      %v344 = vpop.xlane.xlu0 %343
      %v345 = vrcp.pop %v344
      %v346 = vmul.f32 %v341, %v345
      %v347 = vpack.c.bf16 %v346, %v346
      %v349 = vsel %vm335, %v347, 0
      %vm351 = vcmask 1043456
      %v353 = vsel %vm351, %v308, 0
      %355 = vmatpush.bf16.msra.mxu0 0
      %356 = vmatpush.bf16.msra.mxu0 0
      %357 = vmatpush.bf16.msra.mxu0 0
      %358 = vmatpush.bf16.msra.mxu0 0
      %359 = vmatpush.bf16.msra.mxu0 0
      %360 = vmatpush.bf16.msra.mxu0 0
      %361 = vmatpush.bf16.msra.mxu0 0
      %362 = vmatpush.bf16.msra.mxu0 %v353
      %363 = vmatmul.bf16.gmra.mxu0 %v349
      %v364 = vpop.f32.mrf.mxu0
      %v365 = vadd.f32 0.0, %v364
      %v366 = vpop.f32.mrf.mxu0
      %367 = vdwg.mxu0
      %v368 = vpack.c.bf16 %v365, %v365
      %vm369 = vcmask 125952
      %370 = vst.msk [vmem:[%s304] sm:$0xf] %vm369, %v368
      %p371 = scmp.lt.s32.totalorder %s19, 1
      %s372 = scalar_select %p371, %s19, 1
      %p373 = scmp.lt.s32.totalorder %s20, 1
      %s374 = scalar_select %p373, %s20, 1
      %s375 = smul.addr %s372, 2
      %s376 = sadd.s32 %s374, %s375
      %s377 = smul.addr %s376, 4
      %s378 = scalar_lea.vmem %s4, %s377
      // Predicated region
      $region37: #{torch_model_forward.14} parent=35 // pred_check
        %p379 = pneg %p157
      $region38: #{torch_model_forward.14} parent=35 // pred_check_branch
        %381 = sbr.rel (%p379) target = $region40
      $region39: #{torch_model_forward.14} parent=35 // pred_region
        _
      $region40: #{torch_model_forward.14} parent=35 // pred_fallthru
        _
    $region36: #{torch_model_forward.14} parent=5 // pred_fallthru
      _
    %p382 = scmp.le.s32.totalorder 2, %s10
    // Predicated region
    $region41: #{torch_model_forward.14} parent=5 // pred_check
      %p383 = pneg %p382
    $region42: #{torch_model_forward.14} parent=5 // pred_check_branch
      %385 = sbr.rel (%p383) target = $region44
    $region43: #{torch_model_forward.14} parent=5 // pred_region
      %s386 = ssub.s32 %s10, 2
      // Predicated region
      $region45: #{torch_model_forward.14} parent=43 // pred_check
        %p387 = pneg %p163
      $region46: #{torch_model_forward.14} parent=43 // pred_check_branch
        %389 = sbr.rel (%p387) target = $region48
      $region47: #{torch_model_forward.14} parent=43 // pred_region
        %p390 = scmp.lt.s32.totalorder %s21, 1
        %s391 = scalar_select %p390, %s21, 1
        %p392 = scmp.lt.s32.totalorder %s22, 1
        %s393 = scalar_select %p392, %s22, 1
        %s394 = smul.addr %s391, 2
        %s395 = sadd.s32 %s393, %s394
        %s396 = smul.addr %s395, 4
        %s397 = scalar_lea.vmem %s4, %s396
      $region48: #{torch_model_forward.14} parent=43 // pred_fallthru
        _
    $region44: #{torch_model_forward.14} parent=5 // pred_fallthru
      _
  $region6: #{torch_model_forward.14} parent=0 // loop_footer
    %s14 = sadd.s32 1, %s10
  $region7: #{torch_model_forward.14} parent=0 // loop_footer_branch
    %9 = sbr.rel target = $region3
  $region8: #{torch_model_forward.14} parent=0 // loop_exit
    _

// kernel: torch_model_forward.15
$region0: #{torch_model_forward.15}
  #allocation0 [shape = 'u32[]', space=smem, size = 0x4, offset = 0x4, fixed_abs, tag = 'smem constant byte address 0x4 - core index']
  #allocation1 [shape = 'u32[72,128]{1,0:T(1,128)}', space=vmem, size = 0x9000, scoped, tag = 'internal scratch']
  #allocation2 [shape = 'f32[16,32]{1,0:T(8,128)}', space=vmem, size = 0x2000, scoped, tag = 'scratch operand']
  %s0 = inlined_call_operand.vmem [shape: bf16[16,32], index: 0, kind: input, shape index: {}]
  %s1 = inlined_call_operand.vmem [shape: bf16[32,32], index: 1, kind: input, shape index: {}]
  %s2 = inlined_call_operand.vmem [shape: f32[1,32], index: 2, kind: input, shape index: {}]
  %s3 = inlined_call_operand.vmem [shape: bf16[16,32], index: 3, kind: input, shape index: {}]
  %s4 = inlined_call_operand.vmem [shape: f32[1,32], index: 4, kind: input, shape index: {}]
  %s5 = inlined_call_operand.vmem [shape: f32[1,32], index: 5, kind: input, shape index: {}]
  %s6 = inlined_call_operand.vmem [shape: bf16[16,32], index: 6, kind: output, shape index: {}]
  %s7 = sld [smem:[#allocation0]]
  $region42: #{torch_model_forward.15} parent=0
    _
  %s9 = ssub.s32 1, %s7
  %s10 = scalar_select 0, %s9, %s7
  // Predicated region
  $region2: #{torch_model_forward.15} parent=0 // pred_check
    _
  $region3: #{torch_model_forward.15} parent=0 // pred_check_branch
    %12 = sbr.rel (0) target = $region5
  $region4: #{torch_model_forward.15} parent=0 // pred_region
    _
  $region5: #{torch_model_forward.15} parent=0 // pred_fallthru
    _
  // Predicated region
  $region6: #{torch_model_forward.15} parent=0 // pred_check
    _
  $region7: #{torch_model_forward.15} parent=0 // pred_check_branch
    %14 = sbr.rel (0) target = $region9
  $region8: #{torch_model_forward.15} parent=0 // pred_region
    _
  $region9: #{torch_model_forward.15} parent=0 // pred_fallthru
    _
  // Predicated region
  $region10: #{torch_model_forward.15} parent=0 // pred_check
    _
  $region11: #{torch_model_forward.15} parent=0 // pred_check_branch
    %16 = sbr.rel (0) target = $region13
  $region12: #{torch_model_forward.15} parent=0 // pred_region
    _
  $region13: #{torch_model_forward.15} parent=0 // pred_fallthru
    _
  // Predicated region
  $region14: #{torch_model_forward.15} parent=0 // pred_check
    _
  $region15: #{torch_model_forward.15} parent=0 // pred_check_branch
    %18 = sbr.rel (0) target = $region17
  $region16: #{torch_model_forward.15} parent=0 // pred_region
    _
  $region17: #{torch_model_forward.15} parent=0 // pred_fallthru
    _
  // Predicated region
  $region18: #{torch_model_forward.15} parent=0 // pred_check
    _
  $region19: #{torch_model_forward.15} parent=0 // pred_check_branch
    %20 = sbr.rel (0) target = $region21
  $region20: #{torch_model_forward.15} parent=0 // pred_region
    _
  $region21: #{torch_model_forward.15} parent=0 // pred_fallthru
    _
  // Predicated region
  $region22: #{torch_model_forward.15} parent=0 // pred_check
    _
  $region23: #{torch_model_forward.15} parent=0 // pred_check_branch
    %22 = sbr.rel (0) target = $region25
  $region24: #{torch_model_forward.15} parent=0 // pred_region
    _
  $region25: #{torch_model_forward.15} parent=0 // pred_fallthru
    _
  %p24 = scmp.eq.s32.totalorder 0, 0
  // Predicated region
  $region26: #{torch_model_forward.15} parent=0 // pred_check
    %p25 = pneg %p24
  $region27: #{torch_model_forward.15} parent=0 // pred_check_branch
    %27 = sbr.rel (%p25) target = $region29
  $region28: #{torch_model_forward.15} parent=0 // pred_region
    %vm28 = vcmask 261120
    %29 = vst.msk [vmem:[#allocation2] sm:$0xff] %vm28, 0.0
    %30 = vst.msk [vmem:[#allocation2 + $0x8] sm:$0xff] %vm28, 0.0
  $region29: #{torch_model_forward.15} parent=0 // pred_fallthru
    _
  %v31 = vld [vmem:[#allocation2] sm:$0xff]
  %v32 = vld [vmem:[#allocation2 + $0x8] sm:$0xff]
  %v33 = vld [vmem:[%s0] sm:$0xf]
  %v34 = vld [vmem:[%s0 + $0x4] sm:$0xf]
  %v35 = vld [vmem:[%s1] sm:$0xf]
  %v36 = vld [vmem:[%s1 + $0x4] sm:$0xf]
  %v37 = vld [vmem:[%s1 + $0x8] sm:$0xf]
  %v38 = vld [vmem:[%s1 + $0xc] sm:$0xf]
  %v41 = vunpack.c.l.b16 %v33
  %v42 = vunpack.c.l.b16 %v34
  %v43 = vpack.c.b16 %v42, %v41
  %v48 = vunpack.c.l.b16 %v35
  %v49 = vunpack.c.l.b16 %v36
  %v50 = vunpack.c.l.b16 %v37
  %v51 = vunpack.c.l.b16 %v38
  %v52 = vpack.c.b16 %v49, %v48
  %v53 = vpack.c.b16 %v51, %v50
  %vm56 = vcmask 261120
  %v58 = vsel %vm56, %v43, 0
  %60 = vmatpush.bf16.msra.mxu0 0
  %61 = vmatpush.bf16.msra.mxu0 0
  %62 = vmatpush.bf16.msra.mxu0 0
  %63 = vmatpush.bf16.msra.mxu0 0
  %64 = vmatpush.bf16.msra.mxu0 0
  %65 = vmatpush.bf16.msra.mxu0 0
  %66 = vmatpush.bf16.msra.mxu0 %v53
  %67 = vmatpush.bf16.msra.mxu0 %v52
  %68 = vmatmul.bf16.gmra.mxu0 %v58
  %v69 = vpop.f32.mrf.mxu0
  %v70 = vadd.f32 0.0, %v69
  %v71 = vpop.f32.mrf.mxu0
  %v72 = vadd.f32 0.0, %v71
  %73 = vdwg.mxu0
  %v74 = vadd.f32 %v31, %v70
  %v75 = vadd.f32 %v32, %v72
  %76 = vst.msk [vmem:[#allocation2] sm:$0xff] %vm56, %v74
  %77 = vst.msk [vmem:[#allocation2 + $0x8] sm:$0xff] %vm56, %v75
  // Predicated region
  $region30: #{torch_model_forward.15} parent=0 // pred_check
    %p78 = pneg %p24
  $region31: #{torch_model_forward.15} parent=0 // pred_check_branch
    %80 = sbr.rel (%p78) target = $region33
  $region32: #{torch_model_forward.15} parent=0 // pred_region
    %v81 = vld [vmem:[#allocation2] sm:$0xff]
    %v82 = vld [vmem:[#allocation2 + $0x8] sm:$0xff]
    %v83 = vld [vmem:[%s2] sm:$0x1]
    %v85 = vperm.slane %v83, 0
    %v87 = vadd.f32 %v81, %v85
    %v88 = vadd.f32 %v82, %v85
    %v89 = vld [vmem:[%s3] sm:$0xf]
    %v90 = vld [vmem:[%s3 + $0x4] sm:$0xf]
    %v91 = vunpack.c.l.bf16 %v89
    %v92 = vunpack.c.l.bf16 %v90
    %v93 = vadd.f32 %v87, %v91
    %v94 = vadd.f32 %v88, %v92
    %v95 = vsel %vm56, %v93, 0.0
    %96 = vadd.xlane.f32.xlu0 %v95
    %v97 = vpop.xlane.xlu0 %96
    %v98 = vsel %vm56, %v94, 0.0
    %99 = vadd.xlane.f32.xlu0 %v98
    %v100 = vpop.xlane.xlu0 %99
    %v101 = vrcp.pop 32.0
    %v102 = vmul.f32 32.0, %v101
    %v103 = vsub.f32 1.0, %v102
    %v104 = vmul.f32 %v101, %v103
    %v105 = vadd.f32 %v101, %v104
    %vm106 = vweird.f32 %v101
    %v107 = vsel %vm106, %v101, %v105
    %v108 = vmul.f32 %v97, %v107
    %v109 = vmul.f32 %v100, %v107
    %v110 = vsub.f32 %v93, %v108
    %v111 = vsub.f32 %v94, %v109
    %v112 = vmul.f32 %v110, %v110
    %v113 = vmul.f32 %v111, %v111
    %v114 = vsel %vm56, %v112, 0.0
    %115 = vadd.xlane.f32.xlu0 %v114
    %v116 = vpop.xlane.xlu0 %115
    %v117 = vsel %vm56, %v113, 0.0
    %118 = vadd.xlane.f32.xlu0 %v117
    %v119 = vpop.xlane.xlu0 %118
    %v120 = vmul.f32 %v116, %v107
    %v121 = vmul.f32 %v119, %v107
    %v122 = vadd.f32 %v120, 1e-12
    %v123 = vadd.f32 %v121, 1e-12
    %v124 = vrsqrt.pop %v122
    %v125 = vmul.f32 %v124, %v122
    %v126 = vmul.f32 %v125, %v124
    %v127 = vmul.f32 0.5, %v126
    %v128 = vsub.f32 1.5, %v127
    %v129 = vmul.f32 %v124, %v128
    %vm130 = vweird.f32 %v122
    %vm131 = vweird.f32 %v124
    %vm132 = vmor %vm130, %vm131
    %v133 = vsel %vm132, %v124, %v129
    %v134 = vrsqrt.pop %v123
    %v135 = vmul.f32 %v134, %v123
    %v136 = vmul.f32 %v135, %v134
    %v137 = vmul.f32 0.5, %v136
    %v138 = vsub.f32 1.5, %v137
    %v139 = vmul.f32 %v134, %v138
    %vm140 = vweird.f32 %v123
    %vm141 = vweird.f32 %v134
    %vm142 = vmor %vm140, %vm141
    %v143 = vsel %vm142, %v134, %v139
    %v144 = vmul.f32 %v110, %v133
    %v145 = vmul.f32 %v111, %v143
    %v146 = vld [vmem:[%s4] sm:$0x1]
    %v148 = vperm.slane %v146, 0
    %v150 = vmul.f32 %v144, %v148
    %v151 = vmul.f32 %v145, %v148
    %v152 = vld [vmem:[%s5] sm:$0x1]
    %v154 = vperm.slane %v152, 0
    %v156 = vadd.f32 %v150, %v154
    %v157 = vadd.f32 %v151, %v154
    %v158 = vpack.c.bf16 %v156, %v156
    %v159 = vpack.c.bf16 %v157, %v157
    %vm160 = vcmask 257024
    %161 = vst.msk [vmem:[%s6] sm:$0xf] %vm160, %v158
    %162 = vst.msk [vmem:[%s6 + $0x4] sm:$0xf] %vm160, %v159
  $region33: #{torch_model_forward.15} parent=0 // pred_fallthru
    _
  // Predicated region
  $region34: #{torch_model_forward.15} parent=0 // pred_check
    _
  $region35: #{torch_model_forward.15} parent=0 // pred_check_branch
    %164 = sbr.rel (0) target = $region37
  $region36: #{torch_model_forward.15} parent=0 // pred_region
    _
  $region37: #{torch_model_forward.15} parent=0 // pred_fallthru
    _
  // Predicated region
  $region38: #{torch_model_forward.15} parent=0 // pred_check
    _
  $region39: #{torch_model_forward.15} parent=0 // pred_check_branch
    %166 = sbr.rel (0) target = $region41
  $region40: #{torch_model_forward.15} parent=0 // pred_region
    _
  $region41: #{torch_model_forward.15} parent=0 // pred_fallthru
    _

// kernel: torch_model_forward.16
$region0: #{torch_model_forward.16}
  #allocation0 [shape = 'u32[]', space=smem, size = 0x4, offset = 0x4, fixed_abs, tag = 'smem constant byte address 0x4 - core index']
  #allocation1 [shape = 'u32[72,128]{1,0:T(1,128)}', space=vmem, size = 0x9000, scoped, tag = 'internal scratch']
  #allocation2 [shape = 'f32[16,64]{1,0:T(8,128)}', space=vmem, size = 0x2000, scoped, tag = 'scratch operand']
  %s0 = inlined_call_operand.vmem [shape: bf16[16,32], index: 0, kind: input, shape index: {}]
  %s1 = inlined_call_operand.vmem [shape: bf16[32,64], index: 1, kind: input, shape index: {}]
  %s2 = inlined_call_operand.vmem [shape: f32[1,64], index: 2, kind: input, shape index: {}]
  %s3 = inlined_call_operand.vmem [shape: bf16[16,64], index: 3, kind: output, shape index: {}]
  %s4 = sld [smem:[#allocation0]]
  $region30: #{torch_model_forward.16} parent=0
    _
  %s6 = ssub.s32 1, %s4
  %s7 = scalar_select 0, %s6, %s4
  // Predicated region
  $region2: #{torch_model_forward.16} parent=0 // pred_check
    _
  $region3: #{torch_model_forward.16} parent=0 // pred_check_branch
    %9 = sbr.rel (0) target = $region5
  $region4: #{torch_model_forward.16} parent=0 // pred_region
    _
  $region5: #{torch_model_forward.16} parent=0 // pred_fallthru
    _
  // Predicated region
  $region6: #{torch_model_forward.16} parent=0 // pred_check
    _
  $region7: #{torch_model_forward.16} parent=0 // pred_check_branch
    %11 = sbr.rel (0) target = $region9
  $region8: #{torch_model_forward.16} parent=0 // pred_region
    _
  $region9: #{torch_model_forward.16} parent=0 // pred_fallthru
    _
  // Predicated region
  $region10: #{torch_model_forward.16} parent=0 // pred_check
    _
  $region11: #{torch_model_forward.16} parent=0 // pred_check_branch
    %13 = sbr.rel (0) target = $region13
  $region12: #{torch_model_forward.16} parent=0 // pred_region
    _
  $region13: #{torch_model_forward.16} parent=0 // pred_fallthru
    _
  %p15 = scmp.eq.s32.totalorder 0, 0
  // Predicated region
  $region14: #{torch_model_forward.16} parent=0 // pred_check
    %p16 = pneg %p15
  $region15: #{torch_model_forward.16} parent=0 // pred_check_branch
    %18 = sbr.rel (%p16) target = $region17
  $region16: #{torch_model_forward.16} parent=0 // pred_region
    %vm19 = vcmask 523264
    %20 = vst.msk [vmem:[#allocation2] sm:$0xff] %vm19, 0.0
    %21 = vst.msk [vmem:[#allocation2 + $0x8] sm:$0xff] %vm19, 0.0
  $region17: #{torch_model_forward.16} parent=0 // pred_fallthru
    _
  %v22 = vld [vmem:[#allocation2] sm:$0xff]
  %v23 = vld [vmem:[#allocation2 + $0x8] sm:$0xff]
  %v24 = vld [vmem:[%s0] sm:$0xf]
  %v25 = vld [vmem:[%s0 + $0x4] sm:$0xf]
  %v26 = vld [vmem:[%s1] sm:$0xf]
  %v27 = vld [vmem:[%s1 + $0x4] sm:$0xf]
  %v28 = vld [vmem:[%s1 + $0x8] sm:$0xf]
  %v29 = vld [vmem:[%s1 + $0xc] sm:$0xf]
  %v32 = vunpack.c.l.b16 %v24
  %v33 = vunpack.c.l.b16 %v25
  %v34 = vpack.c.b16 %v33, %v32
  %v39 = vunpack.c.l.b16 %v26
  %v40 = vunpack.c.l.b16 %v27
  %v41 = vunpack.c.l.b16 %v28
  %v42 = vunpack.c.l.b16 %v29
  %v43 = vpack.c.b16 %v40, %v39
  %v44 = vpack.c.b16 %v42, %v41
  %vm47 = vcmask 261120
  %v49 = vsel %vm47, %v34, 0
  %51 = vmatpush.bf16.msra.mxu0 0
  %52 = vmatpush.bf16.msra.mxu0 0
  %53 = vmatpush.bf16.msra.mxu0 0
  %54 = vmatpush.bf16.msra.mxu0 0
  %55 = vmatpush.bf16.msra.mxu0 0
  %56 = vmatpush.bf16.msra.mxu0 0
  %57 = vmatpush.bf16.msra.mxu0 %v44
  %58 = vmatpush.bf16.msra.mxu0 %v43
  %59 = vmatmul.bf16.gmra.mxu0 %v49
  %v60 = vpop.f32.mrf.mxu0
  %v61 = vadd.f32 0.0, %v60
  %v62 = vpop.f32.mrf.mxu0
  %v63 = vadd.f32 0.0, %v62
  %64 = vdwg.mxu0
  %v65 = vadd.f32 %v22, %v61
  %v66 = vadd.f32 %v23, %v63
  %vm67 = vcmask 523264
  %68 = vst.msk [vmem:[#allocation2] sm:$0xff] %vm67, %v65
  %69 = vst.msk [vmem:[#allocation2 + $0x8] sm:$0xff] %vm67, %v66
  // Predicated region
  $region18: #{torch_model_forward.16} parent=0 // pred_check
    %p70 = pneg %p15
  $region19: #{torch_model_forward.16} parent=0 // pred_check_branch
    %72 = sbr.rel (%p70) target = $region21
  $region20: #{torch_model_forward.16} parent=0 // pred_region
    %v73 = vld [vmem:[#allocation2] sm:$0xff]
    %v74 = vld [vmem:[#allocation2 + $0x8] sm:$0xff]
    %v75 = vld [vmem:[%s2] sm:$0x1]
    %v77 = vperm.slane %v75, 0
    %v79 = vadd.f32 %v73, %v77
    %v80 = vadd.f32 %v74, %v77
    %v81 = vmul.f32 %v79, 0.5
    %v82 = vmul.f32 %v80, 0.5
    %v83 = vmul.f32 %v79, 0.044715
    %v84 = vmul.f32 %v80, 0.044715
    %v85 = vmul.f32 %v83, %v79
    %v86 = vmul.f32 %v84, %v80
    %v87 = vmul.f32 %v85, %v79
    %v88 = vmul.f32 %v86, %v80
    %v89 = vadd.f32 %v79, %v87
    %v90 = vadd.f32 %v80, %v88
    %v91 = vmul.f32 %v89, 0.7978846
    %v92 = vmul.f32 %v90, 0.7978846
    %v93 = vtanh.pop %v91
    %v94 = vtanh.pop %v92
    %v95 = vadd.f32 %v93, 1.0
    %v96 = vadd.f32 %v94, 1.0
    %v97 = vmul.f32 %v81, %v95
    %v98 = vmul.f32 %v82, %v96
    %v99 = vpack.c.bf16 %v97, %v97
    %v100 = vpack.c.bf16 %v98, %v98
    %vm101 = vcmask 519168
    %102 = vst.msk [vmem:[%s3] sm:$0xf] %vm101, %v99
    %103 = vst.msk [vmem:[%s3 + $0x4] sm:$0xf] %vm101, %v100
  $region21: #{torch_model_forward.16} parent=0 // pred_fallthru
    _
  // Predicated region
  $region22: #{torch_model_forward.16} parent=0 // pred_check
    _
  $region23: #{torch_model_forward.16} parent=0 // pred_check_branch
    %105 = sbr.rel (0) target = $region25
  $region24: #{torch_model_forward.16} parent=0 // pred_region
    _
  $region25: #{torch_model_forward.16} parent=0 // pred_fallthru
    _
  // Predicated region
  $region26: #{torch_model_forward.16} parent=0 // pred_check
    _
  $region27: #{torch_model_forward.16} parent=0 // pred_check_branch
    %107 = sbr.rel (0) target = $region29
  $region28: #{torch_model_forward.16} parent=0 // pred_region
    _
  $region29: #{torch_model_forward.16} parent=0 // pred_fallthru
    _

// kernel: torch_model_forward.23
$region0: #{torch_model_forward.23}
  #allocation0 [shape = 'u32[]', space=smem, size = 0x4, offset = 0x4, fixed_abs, tag = 'smem constant byte address 0x4 - core index']
  #allocation1 [shape = 'u32[72,128]{1,0:T(1,128)}', space=vmem, size = 0x9000, scoped, tag = 'internal scratch']
  #allocation2 [shape = 'f32[16,128]{1,0:T(8,128)}', space=vmem, size = 0x2000, scoped, tag = 'scratch operand']
  %s0 = inlined_call_operand.vmem [shape: bf16[16,32], index: 0, kind: input, shape index: {}]
  %s1 = inlined_call_operand.vmem [shape: bf16[32,128], index: 1, kind: input, shape index: {}]
  %s2 = inlined_call_operand.vmem [shape: f32[1,128], index: 2, kind: input, shape index: {}]
  %s3 = inlined_call_operand.vmem [shape: f32[16,128], index: 3, kind: output, shape index: {}]
  %s4 = sld [smem:[#allocation0]]
  $region30: #{torch_model_forward.23} parent=0
    _
  %s6 = ssub.s32 1, %s4
  %s7 = scalar_select 0, %s6, %s4
  // Predicated region
  $region2: #{torch_model_forward.23} parent=0 // pred_check
    _
  $region3: #{torch_model_forward.23} parent=0 // pred_check_branch
    %9 = sbr.rel (0) target = $region5
  $region4: #{torch_model_forward.23} parent=0 // pred_region
    _
  $region5: #{torch_model_forward.23} parent=0 // pred_fallthru
    _
  // Predicated region
  $region6: #{torch_model_forward.23} parent=0 // pred_check
    _
  $region7: #{torch_model_forward.23} parent=0 // pred_check_branch
    %11 = sbr.rel (0) target = $region9
  $region8: #{torch_model_forward.23} parent=0 // pred_region
    _
  $region9: #{torch_model_forward.23} parent=0 // pred_fallthru
    _
  // Predicated region
  $region10: #{torch_model_forward.23} parent=0 // pred_check
    _
  $region11: #{torch_model_forward.23} parent=0 // pred_check_branch
    %13 = sbr.rel (0) target = $region13
  $region12: #{torch_model_forward.23} parent=0 // pred_region
    _
  $region13: #{torch_model_forward.23} parent=0 // pred_fallthru
    _
  %p15 = scmp.eq.s32.totalorder 0, 0
  // Predicated region
  $region14: #{torch_model_forward.23} parent=0 // pred_check
    %p16 = pneg %p15
  $region15: #{torch_model_forward.23} parent=0 // pred_check_branch
    %18 = sbr.rel (%p16) target = $region17
  $region16: #{torch_model_forward.23} parent=0 // pred_region
    %19 = vst [vmem:[#allocation2] sm:$0xff] 0.0
    %20 = vst [vmem:[#allocation2 + $0x8] sm:$0xff] 0.0
  $region17: #{torch_model_forward.23} parent=0 // pred_fallthru
    _
  %v21 = vld [vmem:[#allocation2] sm:$0xff]
  %v22 = vld [vmem:[#allocation2 + $0x8] sm:$0xff]
  %v23 = vld [vmem:[%s0] sm:$0xf]
  %v24 = vld [vmem:[%s0 + $0x4] sm:$0xf]
  %v25 = vld [vmem:[%s1] sm:$0xf]
  %v26 = vld [vmem:[%s1 + $0x4] sm:$0xf]
  %v27 = vld [vmem:[%s1 + $0x8] sm:$0xf]
  %v28 = vld [vmem:[%s1 + $0xc] sm:$0xf]
  %v31 = vunpack.c.l.b16 %v23
  %v32 = vunpack.c.l.b16 %v24
  %v33 = vpack.c.b16 %v32, %v31
  %v38 = vunpack.c.l.b16 %v25
  %v39 = vunpack.c.l.b16 %v26
  %v40 = vunpack.c.l.b16 %v27
  %v41 = vunpack.c.l.b16 %v28
  %v42 = vpack.c.b16 %v39, %v38
  %v43 = vpack.c.b16 %v41, %v40
  %vm46 = vcmask 261120
  %v48 = vsel %vm46, %v33, 0
  %50 = vmatpush.bf16.msra.mxu0 0
  %51 = vmatpush.bf16.msra.mxu0 0
  %52 = vmatpush.bf16.msra.mxu0 0
  %53 = vmatpush.bf16.msra.mxu0 0
  %54 = vmatpush.bf16.msra.mxu0 0
  %55 = vmatpush.bf16.msra.mxu0 0
  %56 = vmatpush.bf16.msra.mxu0 %v43
  %57 = vmatpush.bf16.msra.mxu0 %v42
  %58 = vmatmul.bf16.gmra.mxu0 %v48
  %v59 = vpop.f32.mrf.mxu0
  %v60 = vadd.f32 0.0, %v59
  %v61 = vpop.f32.mrf.mxu0
  %v62 = vadd.f32 0.0, %v61
  %63 = vdwg.mxu0
  %v64 = vadd.f32 %v21, %v60
  %v65 = vadd.f32 %v22, %v62
  %66 = vst [vmem:[#allocation2] sm:$0xff] %v64
  %67 = vst [vmem:[#allocation2 + $0x8] sm:$0xff] %v65
  // Predicated region
  $region18: #{torch_model_forward.23} parent=0 // pred_check
    %p68 = pneg %p15
  $region19: #{torch_model_forward.23} parent=0 // pred_check_branch
    %70 = sbr.rel (%p68) target = $region21
  $region20: #{torch_model_forward.23} parent=0 // pred_region
    %v71 = vld [vmem:[#allocation2] sm:$0xff]
    %v72 = vld [vmem:[#allocation2 + $0x8] sm:$0xff]
    %v73 = vld [vmem:[%s2] sm:$0x1]
    %v75 = vperm.slane %v73, 0
    %v77 = vadd.f32 %v71, %v75
    %v78 = vadd.f32 %v72, %v75
    %79 = vst [vmem:[%s3] sm:$0xff] %v77
    %80 = vst [vmem:[%s3 + $0x8] sm:$0xff] %v78
  $region21: #{torch_model_forward.23} parent=0 // pred_fallthru
    _
  // Predicated region
  $region22: #{torch_model_forward.23} parent=0 // pred_check
    _
  $region23: #{torch_model_forward.23} parent=0 // pred_check_branch
    %82 = sbr.rel (0) target = $region25
  $region24: #{torch_model_forward.23} parent=0 // pred_region
    _
  $region25: #{torch_model_forward.23} parent=0 // pred_fallthru
    _
  // Predicated region
  $region26: #{torch_model_forward.23} parent=0 // pred_check
    _
  $region27: #{torch_model_forward.23} parent=0 // pred_check_branch
    %84 = sbr.rel (0) target = $region29
  $region28: #{torch_model_forward.23} parent=0 // pred_region
    _
  $region29: #{torch_model_forward.23} parent=0 // pred_fallthru
    _

// kernel: torch_model_forward.17
$region0: #{torch_model_forward.17}
  #allocation0 [shape = 'u32[]', space=smem, size = 0x4, offset = 0x4, fixed_abs, tag = 'smem constant byte address 0x4 - core index']
  #allocation1 [shape = 'u32[72,128]{1,0:T(1,128)}', space=vmem, size = 0x9000, scoped, tag = 'internal scratch']
  #allocation2 [shape = 'f32[16,32]{1,0:T(8,128)}', space=vmem, size = 0x2000, scoped, tag = 'scratch operand']
  %s0 = inlined_call_operand.vmem [shape: bf16[16,64], index: 0, kind: input, shape index: {}]
  %s1 = inlined_call_operand.vmem [shape: bf16[64,32], index: 1, kind: input, shape index: {}]
  %s2 = inlined_call_operand.vmem [shape: f32[1,32], index: 2, kind: input, shape index: {}]
  %s3 = inlined_call_operand.vmem [shape: bf16[16,32], index: 3, kind: input, shape index: {}]
  %s4 = inlined_call_operand.vmem [shape: f32[1,32], index: 4, kind: input, shape index: {}]
  %s5 = inlined_call_operand.vmem [shape: f32[1,32], index: 5, kind: input, shape index: {}]
  %s6 = inlined_call_operand.vmem [shape: bf16[16,32], index: 6, kind: output, shape index: {}]
  %s7 = sld [smem:[#allocation0]]
  $region42: #{torch_model_forward.17} parent=0
    _
  %s9 = ssub.s32 1, %s7
  %s10 = scalar_select 0, %s9, %s7
  // Predicated region
  $region2: #{torch_model_forward.17} parent=0 // pred_check
    _
  $region3: #{torch_model_forward.17} parent=0 // pred_check_branch
    %12 = sbr.rel (0) target = $region5
  $region4: #{torch_model_forward.17} parent=0 // pred_region
    _
  $region5: #{torch_model_forward.17} parent=0 // pred_fallthru
    _
  // Predicated region
  $region6: #{torch_model_forward.17} parent=0 // pred_check
    _
  $region7: #{torch_model_forward.17} parent=0 // pred_check_branch
    %14 = sbr.rel (0) target = $region9
  $region8: #{torch_model_forward.17} parent=0 // pred_region
    _
  $region9: #{torch_model_forward.17} parent=0 // pred_fallthru
    _
  // Predicated region
  $region10: #{torch_model_forward.17} parent=0 // pred_check
    _
  $region11: #{torch_model_forward.17} parent=0 // pred_check_branch
    %16 = sbr.rel (0) target = $region13
  $region12: #{torch_model_forward.17} parent=0 // pred_region
    _
  $region13: #{torch_model_forward.17} parent=0 // pred_fallthru
    _
  // Predicated region
  $region14: #{torch_model_forward.17} parent=0 // pred_check
    _
  $region15: #{torch_model_forward.17} parent=0 // pred_check_branch
    %18 = sbr.rel (0) target = $region17
  $region16: #{torch_model_forward.17} parent=0 // pred_region
    _
  $region17: #{torch_model_forward.17} parent=0 // pred_fallthru
    _
  // Predicated region
  $region18: #{torch_model_forward.17} parent=0 // pred_check
    _
  $region19: #{torch_model_forward.17} parent=0 // pred_check_branch
    %20 = sbr.rel (0) target = $region21
  $region20: #{torch_model_forward.17} parent=0 // pred_region
    _
  $region21: #{torch_model_forward.17} parent=0 // pred_fallthru
    _
  // Predicated region
  $region22: #{torch_model_forward.17} parent=0 // pred_check
    _
  $region23: #{torch_model_forward.17} parent=0 // pred_check_branch
    %22 = sbr.rel (0) target = $region25
  $region24: #{torch_model_forward.17} parent=0 // pred_region
    _
  $region25: #{torch_model_forward.17} parent=0 // pred_fallthru
    _
  %p24 = scmp.eq.s32.totalorder 0, 0
  // Predicated region
  $region26: #{torch_model_forward.17} parent=0 // pred_check
    %p25 = pneg %p24
  $region27: #{torch_model_forward.17} parent=0 // pred_check_branch
    %27 = sbr.rel (%p25) target = $region29
  $region28: #{torch_model_forward.17} parent=0 // pred_region
    %vm28 = vcmask 261120
    %29 = vst.msk [vmem:[#allocation2] sm:$0xff] %vm28, 0.0
    %30 = vst.msk [vmem:[#allocation2 + $0x8] sm:$0xff] %vm28, 0.0
  $region29: #{torch_model_forward.17} parent=0 // pred_fallthru
    _
  %v31 = vld [vmem:[#allocation2] sm:$0xff]
  %v32 = vld [vmem:[#allocation2 + $0x8] sm:$0xff]
  %v33 = vld [vmem:[%s0] sm:$0xf]
  %v34 = vld [vmem:[%s0 + $0x4] sm:$0xf]
  %v35 = vld [vmem:[%s1] sm:$0xf]
  %v36 = vld [vmem:[%s1 + $0x4] sm:$0xf]
  %v37 = vld [vmem:[%s1 + $0x8] sm:$0xf]
  %v38 = vld [vmem:[%s1 + $0xc] sm:$0xf]
  %v39 = vld [vmem:[%s1 + $0x10] sm:$0xf]
  %v40 = vld [vmem:[%s1 + $0x14] sm:$0xf]
  %v41 = vld [vmem:[%s1 + $0x18] sm:$0xf]
  %v42 = vld [vmem:[%s1 + $0x1c] sm:$0xf]
  %v45 = vunpack.c.l.b16 %v33
  %v46 = vunpack.c.l.b16 %v34
  %v47 = vpack.c.b16 %v46, %v45
  %v56 = vunpack.c.l.b16 %v35
  %v57 = vunpack.c.l.b16 %v36
  %v58 = vunpack.c.l.b16 %v37
  %v59 = vunpack.c.l.b16 %v38
  %v60 = vunpack.c.l.b16 %v39
  %v61 = vunpack.c.l.b16 %v40
  %v62 = vunpack.c.l.b16 %v41
  %v63 = vunpack.c.l.b16 %v42
  %v64 = vpack.c.b16 %v57, %v56
  %v65 = vpack.c.b16 %v59, %v58
  %v66 = vpack.c.b16 %v61, %v60
  %v67 = vpack.c.b16 %v63, %v62
  %vm72 = vcmask 523264
  %v74 = vsel %vm72, %v47, 0
  %76 = vmatpush.bf16.msra.mxu0 0
  %77 = vmatpush.bf16.msra.mxu0 0
  %78 = vmatpush.bf16.msra.mxu0 0
  %79 = vmatpush.bf16.msra.mxu0 0
  %80 = vmatpush.bf16.msra.mxu0 %v67
  %81 = vmatpush.bf16.msra.mxu0 %v66
  %82 = vmatpush.bf16.msra.mxu0 %v65
  %83 = vmatpush.bf16.msra.mxu0 %v64
  %84 = vmatmul.bf16.gmra.mxu0 %v74
  %v85 = vpop.f32.mrf.mxu0
  %v86 = vadd.f32 0.0, %v85
  %v87 = vpop.f32.mrf.mxu0
  %v88 = vadd.f32 0.0, %v87
  %89 = vdwg.mxu0
  %v90 = vadd.f32 %v31, %v86
  %v91 = vadd.f32 %v32, %v88
  %vm92 = vcmask 261120
  %93 = vst.msk [vmem:[#allocation2] sm:$0xff] %vm92, %v90
  %94 = vst.msk [vmem:[#allocation2 + $0x8] sm:$0xff] %vm92, %v91
  // Predicated region
  $region30: #{torch_model_forward.17} parent=0 // pred_check
    %p95 = pneg %p24
  $region31: #{torch_model_forward.17} parent=0 // pred_check_branch
    %97 = sbr.rel (%p95) target = $region33
  $region32: #{torch_model_forward.17} parent=0 // pred_region
    %v98 = vld [vmem:[#allocation2] sm:$0xff]
    %v99 = vld [vmem:[#allocation2 + $0x8] sm:$0xff]
    %v100 = vld [vmem:[%s2] sm:$0x1]
    %v102 = vperm.slane %v100, 0
    %v104 = vadd.f32 %v98, %v102
    %v105 = vadd.f32 %v99, %v102
    %v106 = vld [vmem:[%s3] sm:$0xf]
    %v107 = vld [vmem:[%s3 + $0x4] sm:$0xf]
    %v108 = vunpack.c.l.bf16 %v106
    %v109 = vunpack.c.l.bf16 %v107
    %v110 = vadd.f32 %v104, %v108
    %v111 = vadd.f32 %v105, %v109
    %v112 = vsel %vm92, %v110, 0.0
    %113 = vadd.xlane.f32.xlu0 %v112
    %v114 = vpop.xlane.xlu0 %113
    %v115 = vsel %vm92, %v111, 0.0
    %116 = vadd.xlane.f32.xlu0 %v115
    %v117 = vpop.xlane.xlu0 %116
    %v118 = vrcp.pop 32.0
    %v119 = vmul.f32 32.0, %v118
    %v120 = vsub.f32 1.0, %v119
    %v121 = vmul.f32 %v118, %v120
    %v122 = vadd.f32 %v118, %v121
    %vm123 = vweird.f32 %v118
    %v124 = vsel %vm123, %v118, %v122
    %v125 = vmul.f32 %v114, %v124
    %v126 = vmul.f32 %v117, %v124
    %v127 = vsub.f32 %v110, %v125
    %v128 = vsub.f32 %v111, %v126
    %v129 = vmul.f32 %v127, %v127
    %v130 = vmul.f32 %v128, %v128
    %v131 = vsel %vm92, %v129, 0.0
    %132 = vadd.xlane.f32.xlu0 %v131
    %v133 = vpop.xlane.xlu0 %132
    %v134 = vsel %vm92, %v130, 0.0
    %135 = vadd.xlane.f32.xlu0 %v134
    %v136 = vpop.xlane.xlu0 %135
    %v137 = vmul.f32 %v133, %v124
    %v138 = vmul.f32 %v136, %v124
    %v139 = vadd.f32 %v137, 1e-12
    %v140 = vadd.f32 %v138, 1e-12
    %v141 = vrsqrt.pop %v139
    %v142 = vmul.f32 %v141, %v139
    %v143 = vmul.f32 %v142, %v141
    %v144 = vmul.f32 0.5, %v143
    %v145 = vsub.f32 1.5, %v144
    %v146 = vmul.f32 %v141, %v145
    %vm147 = vweird.f32 %v139
    %vm148 = vweird.f32 %v141
    %vm149 = vmor %vm147, %vm148
    %v150 = vsel %vm149, %v141, %v146
    %v151 = vrsqrt.pop %v140
    %v152 = vmul.f32 %v151, %v140
    %v153 = vmul.f32 %v152, %v151
    %v154 = vmul.f32 0.5, %v153
    %v155 = vsub.f32 1.5, %v154
    %v156 = vmul.f32 %v151, %v155
    %vm157 = vweird.f32 %v140
    %vm158 = vweird.f32 %v151
    %vm159 = vmor %vm157, %vm158
    %v160 = vsel %vm159, %v151, %v156
    %v161 = vmul.f32 %v127, %v150
    %v162 = vmul.f32 %v128, %v160
    %v163 = vld [vmem:[%s4] sm:$0x1]
    %v165 = vperm.slane %v163, 0
    %v167 = vmul.f32 %v161, %v165
    %v168 = vmul.f32 %v162, %v165
    %v169 = vld [vmem:[%s5] sm:$0x1]
    %v171 = vperm.slane %v169, 0
    %v173 = vadd.f32 %v167, %v171
    %v174 = vadd.f32 %v168, %v171
    %v175 = vpack.c.bf16 %v173, %v173
    %v176 = vpack.c.bf16 %v174, %v174
    %vm177 = vcmask 257024
    %178 = vst.msk [vmem:[%s6] sm:$0xf] %vm177, %v175
    %179 = vst.msk [vmem:[%s6 + $0x4] sm:$0xf] %vm177, %v176
  $region33: #{torch_model_forward.17} parent=0 // pred_fallthru
    _
  // Predicated region
  $region34: #{torch_model_forward.17} parent=0 // pred_check
    _
  $region35: #{torch_model_forward.17} parent=0 // pred_check_branch
    %181 = sbr.rel (0) target = $region37
  $region36: #{torch_model_forward.17} parent=0 // pred_region
    _
  $region37: #{torch_model_forward.17} parent=0 // pred_fallthru
    _
  // Predicated region
  $region38: #{torch_model_forward.17} parent=0 // pred_check
    _
  $region39: #{torch_model_forward.17} parent=0 // pred_check_branch
    %183 = sbr.rel (0) target = $region41
  $region40: #{torch_model_forward.17} parent=0 // pred_region
    _
  $region41: #{torch_model_forward.17} parent=0 // pred_fallthru
    _

</llo_original>
